<compile_context>
chip_gen: v5e
topology: v5e:2x2
jax: 0.10.0
libtpu: 0.0.40
codegen_flags: <defaults>
</compile_context>

<pallas_src>
import functools

import jax
import jax.numpy as jnp
from jax import lax
from jax.experimental import pallas as pl
from jax.experimental.pallas import tpu as pltpu

HEAD_SIZE = 64  # head_size_a in the torch reference
_VMEM_LIMIT = 32 * 1024 * 1024  # safe on v5e/v6e (128 MiB) and v7x (64 MiB)


def _pick_tile(dim, candidates):
    for c in candidates:
        if c <= dim and dim % c == 0:
            return c
    return dim  # full dimension (always legal as a block)


def _mm_params():
    return pltpu.CompilerParams(
        dimension_semantics=("parallel", "parallel", "arbitrary"),
        vmem_limit_bytes=_VMEM_LIMIT)


# --------------------------------------------------------------------------
# 1) z = act((x + xx * maa_x) @ W1)          (mix fused into the matmul)
# --------------------------------------------------------------------------
def _mixx_mm_kernel(x_ref, xx_ref, maa_ref, w_ref, o_ref, acc_ref, *, act):
    k = pl.program_id(2)

    @pl.when(k == 0)
    def _():
        acc_ref[...] = jnp.zeros_like(acc_ref)

    xin = x_ref[...] + xx_ref[...] * maa_ref[...]          # f32 (tm, tk)
    acc_ref[...] += jnp.dot(xin.astype(jnp.bfloat16), w_ref[...],
                            preferred_element_type=jnp.float32)

    @pl.when(k == pl.num_programs(2) - 1)
    def _():
        y = acc_ref[...]
        if act == "tanh":
            y = jnp.tanh(y)
        o_ref[...] = y.astype(o_ref.dtype)


def mixx_matmul(x, xx, maa, w, *, act=None, out_dtype=jnp.float32):
    M, K = x.shape
    _, Nc = w.shape
    tm = _pick_tile(M, (256, 128, 64, 32, 16, 8))
    tn = _pick_tile(Nc, (256, 128))
    tk = _pick_tile(K, (512, 256, 128))
    grid = (M // tm, Nc // tn, K // tk)
    return pl.pallas_call(
        functools.partial(_mixx_mm_kernel, act=act),
        grid=grid,
        in_specs=[
            pl.BlockSpec((tm, tk), lambda i, j, k: (i, k)),
            pl.BlockSpec((tm, tk), lambda i, j, k: (i, k)),
            pl.BlockSpec((1, tk), lambda i, j, k: (0, k)),
            pl.BlockSpec((tk, tn), lambda i, j, k: (k, j)),
        ],
        out_specs=pl.BlockSpec((tm, tn), lambda i, j, k: (i, j)),
        out_shape=jax.ShapeDtypeStruct((M, Nc), out_dtype),
        scratch_shapes=[pltpu.VMEM((tm, tn), jnp.float32)],
        compiler_params=_mm_params(),
    )(x, xx, maa, w)


# --------------------------------------------------------------------------
# 2) projection with fused LoRA-m and token mix:
#    out = act((x + xx * (maa + z[:, s] @ W2[s])) @ W)
# --------------------------------------------------------------------------
def _proj_mm_kernel(x_ref, xx_ref, maa_ref, z_ref, w2_ref, w_ref, o_ref, acc_ref,
                    *, s_idx, d_lora, act):
    k = pl.program_id(2)

    @pl.when(k == 0)
    def _():
        acc_ref[...] = jnp.zeros_like(acc_ref)

    z_all = z_ref[...]                                     # (tm, 5*D) bf16
    z_s = z_all[:, s_idx * d_lora:(s_idx + 1) * d_lora]    # (tm, D)
    m = jnp.dot(z_s, w2_ref[0], preferred_element_type=jnp.float32)  # (tm, tk)
    xin = x_ref[...] + xx_ref[...] * (maa_ref[...] + m)
    acc_ref[...] += jnp.dot(xin.astype(jnp.bfloat16), w_ref[...],
                            preferred_element_type=jnp.float32)

    @pl.when(k == pl.num_programs(2) - 1)
    def _():
        y = acc_ref[...]
        if act == "tanh":
            y = jnp.tanh(y)
        o_ref[...] = y.astype(o_ref.dtype)


def proj_matmul(x, xx, maa, z, w2, w, *, s_idx, d_lora, act=None,
                out_dtype=jnp.bfloat16):
    M, K = x.shape
    _, Nc = w.shape
    zcols = z.shape[1]
    tm = _pick_tile(M, (256, 128, 64, 32, 16, 8))
    tn = _pick_tile(Nc, (256, 128))
    tk = _pick_tile(K, (512, 256, 128))
    grid = (M // tm, Nc // tn, K // tk)
    return pl.pallas_call(
        functools.partial(_proj_mm_kernel, s_idx=s_idx, d_lora=d_lora, act=act),
        grid=grid,
        in_specs=[
            pl.BlockSpec((tm, tk), lambda i, j, k: (i, k)),            # x
            pl.BlockSpec((tm, tk), lambda i, j, k: (i, k)),            # xx
            pl.BlockSpec((1, tk), lambda i, j, k: (0, k)),             # maa
            pl.BlockSpec((tm, zcols), lambda i, j, k: (i, 0)),         # z (all 5)
            pl.BlockSpec((1, d_lora, tk), lambda i, j, k: (s_idx, 0, k)),  # W2[s]
            pl.BlockSpec((tk, tn), lambda i, j, k: (k, j)),            # W
        ],
        out_specs=pl.BlockSpec((tm, tn), lambda i, j, k: (i, j)),
        out_shape=jax.ShapeDtypeStruct((M, Nc), out_dtype),
        scratch_shapes=[pltpu.VMEM((tm, tn), jnp.float32)],
        compiler_params=_mm_params(),
    )(x, xx, maa, z, w2, w)


# --------------------------------------------------------------------------
# 3) plain matmul + bias (second decay-LoRA stage:  w = td + ww1 @ dW2)
# --------------------------------------------------------------------------
def _mm_bias_kernel(x_ref, w_ref, b_ref, o_ref, acc_ref):
    k = pl.program_id(2)

    @pl.when(k == 0)
    def _():
        acc_ref[...] = jnp.zeros_like(acc_ref)

    acc_ref[...] += jnp.dot(x_ref[...], w_ref[...],
                            preferred_element_type=jnp.float32)

    @pl.when(k == pl.num_programs(2) - 1)
    def _():
        o_ref[...] = (acc_ref[...] + b_ref[...]).astype(o_ref.dtype)


def matmul_bias(x, w, bias, *, out_dtype=jnp.bfloat16):
    M, K = x.shape
    _, Nc = w.shape
    tm = _pick_tile(M, (256, 128, 64, 32, 16, 8))
    tn = _pick_tile(Nc, (256, 128))
    tk = _pick_tile(K, (512, 256, 128))
    grid = (M // tm, Nc // tn, K // tk)
    return pl.pallas_call(
        _mm_bias_kernel,
        grid=grid,
        in_specs=[
            pl.BlockSpec((tm, tk), lambda i, j, k: (i, k)),
            pl.BlockSpec((tk, tn), lambda i, j, k: (k, j)),
            pl.BlockSpec((1, tn), lambda i, j, k: (0, j)),
        ],
        out_specs=pl.BlockSpec((tm, tn), lambda i, j, k: (i, j)),
        out_shape=jax.ShapeDtypeStruct((M, Nc), out_dtype),
        scratch_shapes=[pltpu.VMEM((tm, tn), jnp.float32)],
        compiler_params=_mm_params(),
    )(x, w, bias)


# --------------------------------------------------------------------------
# 4) WKV6 linear-attention recurrence, chunked over T.
#    Per (b, chunk): all matmul-shaped work, state carried in VMEM scratch.
#    Semantics (matches wkv6_cuda.forward, f32 math on bf16 inputs):
#       y[t,i]  = sum_j r[t,j] * (u[j]*k[t,j]*v[t,i] + S[j,i])      (S pre-update)
#       S[j,i] <- S[j,i]*exp(-exp(w[t,j])) + k[t,j]*v[t,i]
# --------------------------------------------------------------------------
def _wkv6_kernel(r_ref, k_ref, v_ref, w_ref, u_ref, o_ref, state_ref, *, H, N, L):
    c = pl.program_id(1)

    @pl.when(c == 0)
    def _():
        state_ref[...] = jnp.zeros_like(state_ref)

    f32 = jnp.float32
    r_all = r_ref[0].astype(f32)        # (L, C)   C = H*N, lane-dense
    k_all = k_ref[0].astype(f32)
    v_all = v_ref[0].astype(f32)
    w_all = w_ref[0].astype(f32)
    u_all = u_ref[...].astype(f32)      # (1, C)

    # Hoisted decay transform + cumulative sums (one EUP pass + one small matmul).
    lw = -jnp.exp(w_all)                                        # (L, C), <= 0
    row = lax.broadcasted_iota(jnp.int32, (L, L), 0)
    col = lax.broadcasted_iota(jnp.int32, (L, L), 1)
    tri_incl = jnp.where(col <= row, 1.0, 0.0).astype(f32)      # s <= t
    strict = col < row                                          # s <  t
    cum_incl = jnp.dot(tri_incl, lw, preferred_element_type=f32)  # sum_{s<=t}
    cum_excl = cum_incl - lw                                      # sum_{s<t}
    total = cum_incl[L - 1:L, :]                                  # (1, C)

    # TODO(synk): for extremely strong decays (exp(w) >> 1) the exp(-cum_incl)
    # factor can overflow for long chunks; chunk length is capped at 32 which
    # is safe for RWKV-x060 decay ranges.
    rd_all = r_all * jnp.exp(cum_excl)            # decays from chunk start
    ki_all = k_all * jnp.exp(-cum_incl)           # intra-chunk key scaling
    ks_all = k_all * jnp.exp(total - cum_incl)    # key scaling for state carry
    ruk_all = r_all * u_all * k_all               # current-step bonus term

    y_parts = []
    for h in range(H):                            # static unroll over heads
        sl = slice(h * N, (h + 1) * N)
        rd, ki, ks = rd_all[:, sl], ki_all[:, sl], ks_all[:, sl]
        v_h = v_all[:, sl]
        S = state_ref[h]                                          # (N, N)

        # inter-chunk contribution
        y_h = jnp.dot(rd, S, preferred_element_type=f32)          # (L, N)
        # intra-chunk (strictly causal) contribution
        A = jnp.dot(rd, ki.T, preferred_element_type=f32)         # (L, L)
        A = jnp.where(strict, A, 0.0)
        diag = jnp.sum(ruk_all[:, sl], axis=-1, keepdims=True)    # (L, 1)
        y_h = y_h + jnp.dot(A, v_h, preferred_element_type=f32) + diag * v_h

        # state carry to next chunk (rank-L update, no per-step diag matmuls)
        dec_tot = jnp.exp(total[:, sl])                           # (1, N)
        kv = jnp.dot(ks.T, v_h, preferred_element_type=f32)       # (N, N)
        state_ref[h] = S * dec_tot.T + kv
        y_parts.append(y_h)

    # single lane-dense (L, C) store
    o_ref[0] = jnp.concatenate(y_parts, axis=-1).astype(o_ref.dtype)


def pallas_wkv6(r, k, v, w, u, *, H, N):
    B, T, C = r.shape
    L = _pick_tile(T, (32, 16))       # chunk length
    nchunk = T // L
    spec = pl.BlockSpec((1, L, C), lambda b, c: (b, c, 0))
    return pl.pallas_call(
        functools.partial(_wkv6_kernel, H=H, N=N, L=L),
        grid=(B, nchunk),
        in_specs=[spec, spec, spec, spec,
                  pl.BlockSpec((1, C), lambda b, c: (0, 0))],
        out_specs=spec,
        out_shape=jax.ShapeDtypeStruct((B, T, C), jnp.bfloat16),
        scratch_shapes=[pltpu.VMEM((H, N, N), jnp.float32)],
        compiler_params=pltpu.CompilerParams(
            dimension_semantics=("parallel", "arbitrary"),
            vmem_limit_bytes=_VMEM_LIMIT),
    )(r, k, v, w, u)


# --------------------------------------------------------------------------
# 5) fused GroupNorm(ln_x) + silu(gate) + output projection
#    out = (GN(y) * silu(g)) @ W_out
# --------------------------------------------------------------------------
def _gn_gate_out_kernel(y_ref, g_ref, lnw_ref, lnb_ref, w_ref, o_ref, acc_ref,
                        *, n_per_head, eps):
    k = pl.program_id(2)

    @pl.when(k == 0)
    def _():
        acc_ref[...] = jnp.zeros_like(acc_ref)

    f32 = jnp.float32
    y = y_ref[...].astype(f32)                     # (tm, tk)
    tm, tk = y.shape
    hk = tk // n_per_head
    # per-head segment matrices (0/1), built from iota -> MXU-friendly reductions
    r_i = lax.broadcasted_iota(jnp.int32, (tk, hk), 0) // n_per_head
    c_i = lax.broadcasted_iota(jnp.int32, (tk, hk), 1)
    seg = jnp.where(r_i == c_i, 1.0, 0.0).astype(f32)        # (tk, hk)
    rT = lax.broadcasted_iota(jnp.int32, (hk, tk), 0)
    cT = lax.broadcasted_iota(jnp.int32, (hk, tk), 1) // n_per_head
    segT = jnp.where(cT == rT, 1.0, 0.0).astype(f32)         # (hk, tk)

    inv_n = 1.0 / n_per_head
    mean = jnp.dot(jnp.dot(y, seg, preferred_element_type=f32), segT,
                   preferred_element_type=f32) * inv_n
    cen = y - mean
    var = jnp.dot(jnp.dot(cen * cen, seg, preferred_element_type=f32), segT,
                  preferred_element_type=f32) * inv_n
    yn = cen * lax.rsqrt(var + eps) * lnw_ref[...] + lnb_ref[...]

    g = g_ref[...].astype(f32)
    xg = yn * (g * jax.nn.sigmoid(g))              # x * silu(g)
    acc_ref[...] += jnp.dot(xg.astype(jnp.bfloat16), w_ref[...],
                            preferred_element_type=f32)

    @pl.when(k == pl.num_programs(2) - 1)
    def _():
        o_ref[...] = acc_ref[...].astype(o_ref.dtype)


def gn_gate_out(y, g, lnw, lnb, w, *, n_per_head, eps):
    M, C = y.shape
    _, Nc = w.shape
    tm = _pick_tile(M, (256, 128, 64, 32, 16, 8))
    tn = _pick_tile(Nc, (256, 128))
    tk = _pick_tile(C, (512, 256, 128))
    assert tk % n_per_head == 0
    grid = (M // tm, Nc // tn, C // tk)
    return pl.pallas_call(
        functools.partial(_gn_gate_out_kernel, n_per_head=n_per_head, eps=eps),
        grid=grid,
        in_specs=[
            pl.BlockSpec((tm, tk), lambda i, j, k: (i, k)),   # y
            pl.BlockSpec((tm, tk), lambda i, j, k: (i, k)),   # g (pre-silu)
            pl.BlockSpec((1, tk), lambda i, j, k: (0, k)),    # ln weight
            pl.BlockSpec((1, tk), lambda i, j, k: (0, k)),    # ln bias
            pl.BlockSpec((tk, tn), lambda i, j, k: (k, j)),   # W_output
        ],
        out_specs=pl.BlockSpec((tm, tn), lambda i, j, k: (i, j)),
        out_shape=jax.ShapeDtypeStruct((M, Nc), jnp.float32),
        scratch_shapes=[pltpu.VMEM((tm, tn), jnp.float32)],
        compiler_params=_mm_params(),
    )(y, g, lnw, lnb, w)


# --------------------------------------------------------------------------
# Forward pass (mirrors RWKV_Tmix_x060_Mod.forward)
# --------------------------------------------------------------------------
def rwkv_tmix_x060_forward(x, p):
    B, T, C = x.shape
    H = p["n_head"]
    N = C // H
    M = B * T

    # time_shift = nn.ZeroPad2d((0, 0, 1, -1)): shift tokens forward by one.
    x_shift = jnp.pad(x, ((0, 0), (1, 0), (0, 0)))[:, :T, :]
    xx = x_shift - x
    x2 = x.reshape(M, C)
    xx2 = xx.reshape(M, C)

    # z = tanh((x + xx * time_maa_x) @ W1)   (fused, single pallas_call)
    z = mixx_matmul(x2, xx2, p["time_maa_x"].reshape(1, C), p["time_maa_w1"],
                    act="tanh", out_dtype=jnp.bfloat16)          # (M, 5*D)
    D = p["time_maa_w1"].shape[1] // 5

    # NOTE: the torch Mod code broadcasts m* of shape (1, B*T, C) against
    # (B, T, C), which only type-checks for B == 1; this per-token form is the
    # canonical RWKV x060 semantics and identical for B == 1 (used below).
    def proj(maa, s_idx, weight, act=None, out_dtype=jnp.bfloat16):
        return proj_matmul(x2, xx2, maa.reshape(1, C), z, p["time_maa_w2"],
                           weight, s_idx=s_idx, d_lora=D, act=act,
                           out_dtype=out_dtype)

    # mw,mk,mv,mr,mg correspond to LoRA slots 0..4
    r = proj(p["time_maa_r"], 3, p["W_receptance"])
    k = proj(p["time_maa_k"], 1, p["W_key"])
    v = proj(p["time_maa_v"], 2, p["W_value"])
    g = proj(p["time_maa_g"], 4, p["W_gate"])
    ww1 = proj(p["time_maa_w"], 0, p["time_decay_w1"], act="tanh")  # (M, D_DECAY)
    w = matmul_bias(ww1, p["time_decay_w2"], p["time_decay"].reshape(1, C),
                    out_dtype=jnp.bfloat16)                         # (M, C)

    def to_btc(a):
        return a.reshape(B, T, C)

    y = pallas_wkv6(to_btc(r), to_btc(k), to_btc(v), to_btc(w),
                    p["time_faaaa"].reshape(1, C).astype(jnp.bfloat16),
                    H=H, N=N)
    y2 = y.reshape(M, C)

    out = gn_gate_out(y2, g, p["ln_weight"].reshape(1, C),
                      p["ln_bias"].reshape(1, C), p["W_output"],
                      n_per_head=N, eps=p["ln_eps"])
    return out.reshape(B, T, C)


# --------------------------------------------------------------------------
# Pure-JAX sequential reference for the WKV6 recurrence (correctness check)
# --------------------------------------------------------------------------
def _wkv6_reference(r, k, v, w, u, H, N):
    B, T, C = r.shape
    f32 = jnp.float32
    r4 = r.astype(f32).reshape(B, T, H, N).transpose(1, 0, 2, 3)
    k4 = k.astype(f32).reshape(B, T, H, N).transpose(1, 0, 2, 3)
    v4 = v.astype(f32).reshape(B, T, H, N).transpose(1, 0, 2, 3)
    wd = jnp.exp(-jnp.exp(w.astype(f32))).reshape(B, T, H, N).transpose(1, 0, 2, 3)
    u4 = u.astype(f32).reshape(1, H, N)

    def step(S, inp):
        rt, kt, vt, wt = inp                                   # (B, H, N)
        y = jnp.einsum('bhj,bhji->bhi', rt, S) + \
            jnp.sum(rt * u4 * kt, -1, keepdims=True) * vt
        S = S * wt[..., :, None] + kt[..., :, None] * vt[..., None, :]
        return S, y

    S0 = jnp.zeros((B, H, N, N), f32)
    _, ys = lax.scan(step, S0, (r4, k4, v4, wd))
    return ys.transpose(1, 0, 2, 3).reshape(B, T, C)


# --------------------------------------------------------------------------
# Deterministic parameter construction (shapes from the module __init__)
# --------------------------------------------------------------------------
def init_params(key, C, H, n_layer=4, layer_id=1, d_mix=16, d_decay=32):
    N = C // H
    ratio_0_to_1 = layer_id / (n_layer - 1)
    ratio_1_to_almost0 = 1.0 - layer_id / n_layer
    ddd = jnp.arange(C, dtype=jnp.float32) / C
    n = jnp.arange(C, dtype=jnp.float32)
    decay_speed = -6.0 + 5.0 * (n / (C - 1)) ** (0.7 + 1.3 * ratio_0_to_1)
    zigzag = ((n + 1) % 3 - 1) * 0.1
    faaaa = ratio_0_to_1 * (1.0 - n / (C - 1)) + zigzag

    ks = jax.random.split(key, 9)
    u = lambda k_, shape, s: jax.random.uniform(k_, shape, jnp.float32, -s, s)
    bf = lambda a: a.astype(jnp.bfloat16)      # big matmul weights stored bf16
    return dict(
        n_head=H,
        time_maa_x=1.0 - ddd ** ratio_1_to_almost0,
        time_maa_w=1.0 - ddd ** ratio_1_to_almost0,
        time_maa_k=1.0 - ddd ** ratio_1_to_almost0,
        time_maa_v=1.0 - (ddd ** ratio_1_to_almost0 + 0.3 * ratio_0_to_1),
        time_maa_r=1.0 - ddd ** (0.5 * ratio_1_to_almost0),
        time_maa_g=1.0 - ddd ** (0.5 * ratio_1_to_almost0),
        time_maa_w1=bf(u(ks[0], (C, 5 * d_mix), 1e-2)),
        time_maa_w2=bf(u(ks[1], (5, d_mix, C), 1e-2)),
        time_decay=decay_speed,                               # f32 bias
        time_decay_w1=bf(u(ks[2], (C, d_decay), 1e-2)),
        time_decay_w2=bf(u(ks[3], (d_decay, C), 1e-2)),
        time_faaaa=faaaa.reshape(H, N),
        W_receptance=bf(u(ks[4], (C, C), C ** -0.5)),
        W_key=bf(u(ks[5], (C, C), C ** -0.5)),
        W_value=bf(u(ks[6], (C, C), C ** -0.5)),
        W_gate=bf(u(ks[7], (C, C), C ** -0.5)),
        W_output=bf(u(ks[8], (C, C), C ** -0.5)),
        ln_weight=jnp.ones((C,), jnp.float32),
        ln_bias=jnp.zeros((C,), jnp.float32),
        ln_eps=64e-5,  # (1e-5) * head_size_divisor**2, head_size_divisor = 8
    )


if __name__ == "__main__":
    # The Mod module's (1, B*T, C) broadcast implies B == 1 for the full block.
    B, T = 1, 16
    C = 128
    H = C // HEAD_SIZE   # 2 heads of size 64
    key = jax.random.PRNGKey(0)
    kp, kx = jax.random.split(key)
    params = init_params(kp, C, H)
    x = jax.random.normal(kx, (B, T, C), jnp.float32)

    # -- standalone check of the chunked WKV6 kernel vs a sequential scan --
    kc = jax.random.split(jax.random.PRNGKey(1), 5)
    Bc, Tc = 2, 64                      # 2 chunks of 32 -> exercises state carry
    rr = jax.random.normal(kc[0], (Bc, Tc, C), jnp.float32).astype(jnp.bfloat16)
    kk = jax.random.normal(kc[1], (Bc, Tc, C), jnp.float32).astype(jnp.bfloat16)
    vv = jax.random.normal(kc[2], (Bc, Tc, C), jnp.float32).astype(jnp.bfloat16)
    ww = (jax.random.normal(kc[3], (Bc, Tc, C), jnp.float32) * 0.5
          - 2.0).astype(jnp.bfloat16)
    uu = jax.random.uniform(kc[4], (1, C), jnp.float32, -1.0, 1.0).astype(jnp.bfloat16)
    y_kern = jax.jit(functools.partial(pallas_wkv6, H=H, N=HEAD_SIZE))(rr, kk, vv, ww, uu)
    jax.block_until_ready(y_kern)
    y_ref = _wkv6_reference(rr, kk, vv, ww, uu, H, HEAD_SIZE)
    assert jnp.allclose(y_kern.astype(jnp.float32), y_ref, rtol=3e-2, atol=3e-2), \
        float(jnp.max(jnp.abs(y_kern.astype(jnp.float32) - y_ref)))

    # -- full fused forward --
    fwd = jax.jit(lambda inp: rwkv_tmix_x060_forward(inp, params))
    out = fwd(x)
    jax.block_until_ready(out)
    assert out.shape == (B, T, C)
    assert bool(jnp.all(jnp.isfinite(out)))
    print("KERNEL_OK")
</pallas_src>

<mosaic_0001>
module attributes {stable_mosaic.version = 11 : i64} {
  func.func @_wkv6_kernel(%arg0: i32, %arg1: i32, %arg2: memref<1x32x128xbf16, #tpu.memory_space<vmem>>, %arg3: memref<1x32x128xbf16, #tpu.memory_space<vmem>>, %arg4: memref<1x32x128xbf16, #tpu.memory_space<vmem>>, %arg5: memref<1x32x128xbf16, #tpu.memory_space<vmem>>, %arg6: memref<1x128xbf16, #tpu.memory_space<vmem>>, %arg7: memref<1x32x128xbf16, #tpu.memory_space<vmem>>, %arg8: memref<2x64x64xf32, #tpu.memory_space<vmem>>) attributes {dimension_semantics = [#tpu.dimension_semantics<parallel>, #tpu.dimension_semantics<arbitrary>], iteration_bounds = array<i64: 2, 2>, scalar_prefetch = 0 : i64, scratch_operands = 1 : i64, tpu.core_type = #tpu.core_type<tc>, window_params = [{transform_indices = @transform_0, window_bounds = array<i64: 1, 32, 128>}, {transform_indices = @transform_1, window_bounds = array<i64: 1, 32, 128>}, {transform_indices = @transform_2, window_bounds = array<i64: 1, 32, 128>}, {transform_indices = @transform_3, window_bounds = array<i64: 1, 32, 128>}, {pipeline_mode = #tpu.pipeline_mode<synchronous>, transform_indices = @transform_4, window_bounds = array<i64: 1, 128>}, {transform_indices = @transform_5, window_bounds = array<i64: 1, 32, 128>}]} {
    %c0_i32 = arith.constant 0 : i32
    %0 = arith.cmpi eq, %arg1, %c0_i32 : i32
    %1 = arith.extui %0 : i1 to i32
    %c0_i32_0 = arith.constant 0 : i32
    %2 = arith.cmpi ne, %1, %c0_i32_0 : i32
    scf.if %2 {
      %cst_44 = arith.constant 0.000000e+00 : f32
      %108 = vector.broadcast %cst_44 : f32 to vector<2x64x64xf32>
      %c0_45 = arith.constant 0 : index
      %c0_46 = arith.constant 0 : index
      %c0_47 = arith.constant 0 : index
      %109 = vector.load %arg8[%c0_45, %c0_46, %c0_47] : memref<2x64x64xf32, #tpu.memory_space<vmem>>, vector<2x64x64xf32>
      tpu.vector_store %arg8[%c0_45, %c0_46, %c0_47], %108 {strides = array<i32>} : memref<2x64x64xf32, #tpu.memory_space<vmem>>, vector<2x64x64xf32>,
    } else {
    }
    %c0 = arith.constant 0 : index
    %c0_1 = arith.constant 0 : index
    %c0_2 = arith.constant 0 : index
    %3 = vector.load %arg2[%c0, %c0_1, %c0_2] : memref<1x32x128xbf16, #tpu.memory_space<vmem>>, vector<1x32x128xbf16>
    %4 = vector.shape_cast %3 : vector<1x32x128xbf16> to vector<32x128xbf16>
    %5 = arith.extf %4 : vector<32x128xbf16> to vector<32x128xf32>
    %c0_3 = arith.constant 0 : index
    %c0_4 = arith.constant 0 : index
    %c0_5 = arith.constant 0 : index
    %6 = vector.load %arg3[%c0_3, %c0_4, %c0_5] : memref<1x32x128xbf16, #tpu.memory_space<vmem>>, vector<1x32x128xbf16>
    %7 = vector.shape_cast %6 : vector<1x32x128xbf16> to vector<32x128xbf16>
    %8 = arith.extf %7 : vector<32x128xbf16> to vector<32x128xf32>
    %c0_6 = arith.constant 0 : index
    %c0_7 = arith.constant 0 : index
    %c0_8 = arith.constant 0 : index
    %9 = vector.load %arg4[%c0_6, %c0_7, %c0_8] : memref<1x32x128xbf16, #tpu.memory_space<vmem>>, vector<1x32x128xbf16>
    %10 = vector.shape_cast %9 : vector<1x32x128xbf16> to vector<32x128xbf16>
    %11 = arith.extf %10 : vector<32x128xbf16> to vector<32x128xf32>
    %c0_9 = arith.constant 0 : index
    %c0_10 = arith.constant 0 : index
    %c0_11 = arith.constant 0 : index
    %12 = vector.load %arg5[%c0_9, %c0_10, %c0_11] : memref<1x32x128xbf16, #tpu.memory_space<vmem>>, vector<1x32x128xbf16>
    %13 = vector.shape_cast %12 : vector<1x32x128xbf16> to vector<32x128xbf16>
    %14 = arith.extf %13 : vector<32x128xbf16> to vector<32x128xf32>
    %c0_12 = arith.constant 0 : index
    %c0_13 = arith.constant 0 : index
    %15 = vector.load %arg6[%c0_12, %c0_13] : memref<1x128xbf16, #tpu.memory_space<vmem>>, vector<1x128xbf16>
    %16 = arith.extf %15 : vector<1x128xbf16> to vector<1x128xf32>
    %17 = math.exp %14 : vector<32x128xf32>
    %cst = arith.constant 0.000000e+00 : f32
    %18 = vector.broadcast %cst : f32 to vector<32x128xf32>
    %19 = arith.subf %18, %17 : vector<32x128xf32>
    %20 = tpu.iota {dimensions = array<i32: 0>} : vector<32x32xi32>
    %21 = tpu.iota {dimensions = array<i32: 1>} : vector<32x32xi32>
    %22 = arith.cmpi sle, %21, %20 : vector<32x32xi32>
    %cst_14 = arith.constant 1.000000e+00 : f32
    %cst_15 = arith.constant 0.000000e+00 : f32
    %23 = vector.broadcast %cst_14 : f32 to vector<32x32xf32>
    %24 = vector.broadcast %cst_15 : f32 to vector<32x32xf32>
    %25 = arith.select %22, %23, %24 : vector<32x32xi1>, vector<32x32xf32>
    %26 = arith.cmpi slt, %21, %20 : vector<32x32xi32>
    %cst_16 = arith.constant dense<0.000000e+00> : vector<32x128xf32>
    %27 = tpu.matmul %25, %19, %cst_16 {dimension_numbers = #tpu.dot_dimension_numbers<[1], [0], [0], [1], [0, 0, 1, 1], [], []>} : vector<32x32xf32>, vector<32x128xf32>, vector<32x128xf32> -> vector<32x128xf32>
    %28 = arith.subf %27, %19 : vector<32x128xf32>
    %29 = vector.extract_strided_slice %27 {offsets = [31, 0], sizes = [1, 128], strides = [1, 1]} : vector<32x128xf32> to vector<1x128xf32>
    %30 = math.exp %28 : vector<32x128xf32>
    %31 = arith.mulf %5, %30 : vector<32x128xf32>
    %cst_17 = arith.constant 0.000000e+00 : f32
    %32 = vector.broadcast %cst_17 : f32 to vector<32x128xf32>
    %33 = arith.subf %32, %27 : vector<32x128xf32>
    %34 = math.exp %33 : vector<32x128xf32>
    %35 = arith.mulf %8, %34 : vector<32x128xf32>
    %36 = vector.broadcast %29 : vector<1x128xf32> to vector<32x128xf32>
    %37 = arith.subf %36, %27 : vector<32x128xf32>
    %38 = math.exp %37 : vector<32x128xf32>
    %39 = arith.mulf %8, %38 : vector<32x128xf32>
    %40 = vector.broadcast %16 : vector<1x128xf32> to vector<32x128xf32>
    %41 = arith.mulf %5, %40 : vector<32x128xf32>
    %42 = arith.mulf %41, %8 : vector<32x128xf32>
    %43 = vector.extract_strided_slice %31 {offsets = [0, 0], sizes = [32, 64], strides = [1, 1]} : vector<32x128xf32> to vector<32x64xf32>
    %44 = vector.extract_strided_slice %35 {offsets = [0, 0], sizes = [32, 64], strides = [1, 1]} : vector<32x128xf32> to vector<32x64xf32>
    %45 = vector.extract_strided_slice %39 {offsets = [0, 0], sizes = [32, 64], strides = [1, 1]} : vector<32x128xf32> to vector<32x64xf32>
    %46 = vector.extract_strided_slice %11 {offsets = [0, 0], sizes = [32, 64], strides = [1, 1]} : vector<32x128xf32> to vector<32x64xf32>
    %c0_18 = arith.constant 0 : index
    %c0_19 = arith.constant 0 : index
    %c0_20 = arith.constant 0 : index
    %47 = vector.load %arg8[%c0_18, %c0_19, %c0_20] : memref<2x64x64xf32, #tpu.memory_space<vmem>>, vector<1x64x64xf32>
    %48 = vector.shape_cast %47 : vector<1x64x64xf32> to vector<64x64xf32>
    %cst_21 = arith.constant dense<0.000000e+00> : vector<32x64xf32>
    %49 = tpu.matmul %43, %48, %cst_21 {dimension_numbers = #tpu.dot_dimension_numbers<[1], [0], [0], [1], [0, 0, 1, 1], [], []>} : vector<32x64xf32>, vector<64x64xf32>, vector<32x64xf32> -> vector<32x64xf32>
    %50 = tpu.transpose %44, [1, 0] : vector<32x64xf32> -> vector<64x32xf32>
    %cst_22 = arith.constant dense<0.000000e+00> : vector<32x32xf32>
    %51 = tpu.matmul %43, %50, %cst_22 {dimension_numbers = #tpu.dot_dimension_numbers<[1], [0], [0], [1], [0, 0, 1, 1], [], []>} : vector<32x64xf32>, vector<64x32xf32>, vector<32x32xf32> -> vector<32x32xf32>
    %cst_23 = arith.constant 0.000000e+00 : f32
    %52 = vector.broadcast %cst_23 : f32 to vector<32x32xf32>
    %53 = arith.select %26, %51, %52 : vector<32x32xi1>, vector<32x32xf32>
    %54 = vector.extract_strided_slice %42 {offsets = [0, 0], sizes = [32, 64], strides = [1, 1]} : vector<32x128xf32> to vector<32x64xf32>
    %cst_24 = arith.constant dense<0.000000e+00> : vector<32xf32>
    %55 = vector.multi_reduction <add>, %54, %cst_24 [1] : vector<32x64xf32> to vector<32xf32>
    %56 = vector.shape_cast %55 : vector<32xf32> to vector<32x1xf32>
    %cst_25 = arith.constant dense<0.000000e+00> : vector<32x64xf32>
    %57 = tpu.matmul %53, %46, %cst_25 {dimension_numbers = #tpu.dot_dimension_numbers<[1], [0], [0], [1], [0, 0, 1, 1], [], []>} : vector<32x32xf32>, vector<32x64xf32>, vector<32x64xf32> -> vector<32x64xf32>
    %58 = arith.addf %49, %57 : vector<32x64xf32>
    %59 = vector.broadcast %56 : vector<32x1xf32> to vector<32x64xf32>
    %60 = arith.mulf %59, %46 : vector<32x64xf32>
    %61 = arith.addf %58, %60 : vector<32x64xf32>
    %62 = vector.extract_strided_slice %29 {offsets = [0, 0], sizes = [1, 64], strides = [1, 1]} : vector<1x128xf32> to vector<1x64xf32>
    %63 = math.exp %62 : vector<1x64xf32>
    %64 = tpu.transpose %45, [1, 0] : vector<32x64xf32> -> vector<64x32xf32>
    %cst_26 = arith.constant dense<0.000000e+00> : vector<64x64xf32>
    %65 = tpu.matmul %64, %46, %cst_26 {dimension_numbers = #tpu.dot_dimension_numbers<[1], [0], [0], [1], [0, 0, 1, 1], [], []>} : vector<64x32xf32>, vector<32x64xf32>, vector<64x64xf32> -> vector<64x64xf32>
    %66 = tpu.transpose %63, [1, 0] : vector<1x64xf32> -> vector<64x1xf32>
    %67 = vector.broadcast %66 : vector<64x1xf32> to vector<64x64xf32>
    %68 = arith.mulf %48, %67 : vector<64x64xf32>
    %69 = arith.addf %68, %65 : vector<64x64xf32>
    %c0_27 = arith.constant 0 : index
    %c0_28 = arith.constant 0 : index
    %c0_29 = arith.constant 0 : index
    %70 = vector.load %arg8[%c0_27, %c0_28, %c0_29] : memref<2x64x64xf32, #tpu.memory_space<vmem>>, vector<1x64x64xf32>
    %71 = vector.shape_cast %70 : vector<1x64x64xf32> to vector<64x64xf32>
    %72 = vector.shape_cast %69 : vector<64x64xf32> to vector<1x64x64xf32>
    tpu.vector_store %arg8[%c0_27, %c0_28, %c0_29], %72 {strides = array<i32>} : memref<2x64x64xf32, #tpu.memory_space<vmem>>, vector<1x64x64xf32>,
    %73 = vector.extract_strided_slice %31 {offsets = [0, 64], sizes = [32, 64], strides = [1, 1]} : vector<32x128xf32> to vector<32x64xf32>
    %74 = vector.extract_strided_slice %35 {offsets = [0, 64], sizes = [32, 64], strides = [1, 1]} : vector<32x128xf32> to vector<32x64xf32>
    %75 = vector.extract_strided_slice %39 {offsets = [0, 64], sizes = [32, 64], strides = [1, 1]} : vector<32x128xf32> to vector<32x64xf32>
    %76 = vector.extract_strided_slice %11 {offsets = [0, 64], sizes = [32, 64], strides = [1, 1]} : vector<32x128xf32> to vector<32x64xf32>
    %c1 = arith.constant 1 : index
    %c0_30 = arith.constant 0 : index
    %c0_31 = arith.constant 0 : index
    %77 = vector.load %arg8[%c1, %c0_30, %c0_31] : memref<2x64x64xf32, #tpu.memory_space<vmem>>, vector<1x64x64xf32>
    %78 = vector.shape_cast %77 : vector<1x64x64xf32> to vector<64x64xf32>
    %cst_32 = arith.constant dense<0.000000e+00> : vector<32x64xf32>
    %79 = tpu.matmul %73, %78, %cst_32 {dimension_numbers = #tpu.dot_dimension_numbers<[1], [0], [0], [1], [0, 0, 1, 1], [], []>} : vector<32x64xf32>, vector<64x64xf32>, vector<32x64xf32> -> vector<32x64xf32>
    %80 = tpu.transpose %74, [1, 0] : vector<32x64xf32> -> vector<64x32xf32>
    %cst_33 = arith.constant dense<0.000000e+00> : vector<32x32xf32>
    %81 = tpu.matmul %73, %80, %cst_33 {dimension_numbers = #tpu.dot_dimension_numbers<[1], [0], [0], [1], [0, 0, 1, 1], [], []>} : vector<32x64xf32>, vector<64x32xf32>, vector<32x32xf32> -> vector<32x32xf32>
    %cst_34 = arith.constant 0.000000e+00 : f32
    %82 = vector.broadcast %cst_34 : f32 to vector<32x32xf32>
    %83 = arith.select %26, %81, %82 : vector<32x32xi1>, vector<32x32xf32>
    %84 = vector.extract_strided_slice %42 {offsets = [0, 64], sizes = [32, 64], strides = [1, 1]} : vector<32x128xf32> to vector<32x64xf32>
    %cst_35 = arith.constant dense<0.000000e+00> : vector<32xf32>
    %85 = vector.multi_reduction <add>, %84, %cst_35 [1] : vector<32x64xf32> to vector<32xf32>
    %86 = vector.shape_cast %85 : vector<32xf32> to vector<32x1xf32>
    %cst_36 = arith.constant dense<0.000000e+00> : vector<32x64xf32>
    %87 = tpu.matmul %83, %76, %cst_36 {dimension_numbers = #tpu.dot_dimension_numbers<[1], [0], [0], [1], [0, 0, 1, 1], [], []>} : vector<32x32xf32>, vector<32x64xf32>, vector<32x64xf32> -> vector<32x64xf32>
    %88 = arith.addf %79, %87 : vector<32x64xf32>
    %89 = vector.broadcast %86 : vector<32x1xf32> to vector<32x64xf32>
    %90 = arith.mulf %89, %76 : vector<32x64xf32>
    %91 = arith.addf %88, %90 : vector<32x64xf32>
    %92 = vector.extract_strided_slice %29 {offsets = [0, 64], sizes = [1, 64], strides = [1, 1]} : vector<1x128xf32> to vector<1x64xf32>
    %93 = math.exp %92 : vector<1x64xf32>
    %94 = tpu.transpose %75, [1, 0] : vector<32x64xf32> -> vector<64x32xf32>
    %cst_37 = arith.constant dense<0.000000e+00> : vector<64x64xf32>
    %95 = tpu.matmul %94, %76, %cst_37 {dimension_numbers = #tpu.dot_dimension_numbers<[1], [0], [0], [1], [0, 0, 1, 1], [], []>} : vector<64x32xf32>, vector<32x64xf32>, vector<64x64xf32> -> vector<64x64xf32>
    %96 = tpu.transpose %93, [1, 0] : vector<1x64xf32> -> vector<64x1xf32>
    %97 = vector.broadcast %96 : vector<64x1xf32> to vector<64x64xf32>
    %98 = arith.mulf %78, %97 : vector<64x64xf32>
    %99 = arith.addf %98, %95 : vector<64x64xf32>
    %c1_38 = arith.constant 1 : index
    %c0_39 = arith.constant 0 : index
    %c0_40 = arith.constant 0 : index
    %100 = vector.load %arg8[%c1_38, %c0_39, %c0_40] : memref<2x64x64xf32, #tpu.memory_space<vmem>>, vector<1x64x64xf32>
    %101 = vector.shape_cast %100 : vector<1x64x64xf32> to vector<64x64xf32>
    %102 = vector.shape_cast %99 : vector<64x64xf32> to vector<1x64x64xf32>
    tpu.vector_store %arg8[%c1_38, %c0_39, %c0_40], %102 {strides = array<i32>} : memref<2x64x64xf32, #tpu.memory_space<vmem>>, vector<1x64x64xf32>,
    %103 = tpu.concatenate %61, %91 in 1 : vector<32x64xf32>, vector<32x64xf32> -> vector<32x128xf32>
    %104 = arith.truncf %103 : vector<32x128xf32> to vector<32x128xbf16>
    %c0_41 = arith.constant 0 : index
    %c0_42 = arith.constant 0 : index
    %c0_43 = arith.constant 0 : index
    %105 = vector.load %arg7[%c0_41, %c0_42, %c0_43] : memref<1x32x128xbf16, #tpu.memory_space<vmem>>, vector<1x32x128xbf16>
    %106 = vector.shape_cast %105 : vector<1x32x128xbf16> to vector<32x128xbf16>
    %107 = vector.shape_cast %104 : vector<32x128xbf16> to vector<1x32x128xbf16>
    tpu.vector_store %arg7[%c0_41, %c0_42, %c0_43], %107 {strides = array<i32>} : memref<1x32x128xbf16, #tpu.memory_space<vmem>>, vector<1x32x128xbf16>,
    return
  }
  func.func @transform_0(%arg0: i32, %arg1: i32) -> (i32, i32, i32) {
    %c0_i32 = arith.constant 0 : i32
    %c0_i32_0 = arith.constant 0 : i32
    return %arg0, %arg1, %c0_i32 : i32, i32, i32
  }
  func.func @transform_1(%arg0: i32, %arg1: i32) -> (i32, i32, i32) {
    %c0_i32 = arith.constant 0 : i32
    %c0_i32_0 = arith.constant 0 : i32
    return %arg0, %arg1, %c0_i32 : i32, i32, i32
  }
  func.func @transform_2(%arg0: i32, %arg1: i32) -> (i32, i32, i32) {
    %c0_i32 = arith.constant 0 : i32
    %c0_i32_0 = arith.constant 0 : i32
    return %arg0, %arg1, %c0_i32 : i32, i32, i32
  }
  func.func @transform_3(%arg0: i32, %arg1: i32) -> (i32, i32, i32) {
    %c0_i32 = arith.constant 0 : i32
    %c0_i32_0 = arith.constant 0 : i32
    return %arg0, %arg1, %c0_i32 : i32, i32, i32
  }
  func.func @transform_4(%arg0: i32, %arg1: i32) -> (i32, i32) {
    %c0_i32 = arith.constant 0 : i32
    %c0_i32_0 = arith.constant 0 : i32
    %c0_i32_1 = arith.constant 0 : i32
    return %c0_i32, %c0_i32_0 : i32, i32
  }
  func.func @transform_5(%arg0: i32, %arg1: i32) -> (i32, i32, i32) {
    %c0_i32 = arith.constant 0 : i32
    %c0_i32_0 = arith.constant 0 : i32
    return %arg0, %arg1, %c0_i32 : i32, i32, i32
  }
}

</mosaic_0001>

<llo_original>
// kernel: pallas_wkv6.1
$region0: #{pallas_wkv6.1}
  #allocation0 [shape = 'u32[]', space=smem, size = 0x4, offset = 0x4, fixed_abs, tag = 'smem constant byte address 0x4 - core index']
  #allocation1 [shape = 'u32[72,128]{1,0:T(1,128)}', space=vmem, size = 0x9000, scoped, tag = 'internal scratch']
  #allocation2 [shape = 'f32[2,64,64]{2,1,0:T(8,128)}', space=vmem, size = 0x10000, scoped, tag = 'scratch operand']
  %s0 = inlined_call_operand.hbm [shape: bf16[2,64,128], index: 0, kind: input, shape index: {}]
  %s1 = inlined_call_operand.hbm [shape: bf16[2,64,128], index: 1, kind: input, shape index: {}]
  %s2 = inlined_call_operand.hbm [shape: bf16[2,64,128], index: 2, kind: input, shape index: {}]
  %s3 = inlined_call_operand.hbm [shape: bf16[2,64,128], index: 3, kind: input, shape index: {}]
  %s4 = inlined_call_operand.vmem [shape: bf16[1,128], index: 4, kind: input, shape index: {}]
  %s5 = inlined_call_operand.hbm [shape: bf16[2,64,128], index: 5, kind: output, shape index: {}]
  %s6 = sld [smem:[#allocation0]]
  $region73: #{pallas_wkv6.1} parent=0
    _
  %s8 = ssub.s32 1, %s6
  %s9 = scalar_select 0, %s8, %s6
  $region1: #{pallas_wkv6.1} parent=0
    #allocation3 [shape = 'u8[16384]{0}', space=vmem, size = 0x4000, scoped, tag = 'input window, operand 0']
    #allocation4 [shape = 's32[2]{0}', space=sflag, size = 0x8, scoped, tag = 'scoped memory for pallas_wkv6.1']
    #allocation5 [shape = 's32[2]{0}', space=sflag, size = 0x8, scoped, tag = 'scoped memory for pallas_wkv6.1']
    #allocation6 [shape = 'u8[16384]{0}', space=vmem, size = 0x4000, scoped, tag = 'input window, operand 1']
    #allocation7 [shape = 's32[2]{0}', space=sflag, size = 0x8, scoped, tag = 'scoped memory for pallas_wkv6.1']
    #allocation8 [shape = 'u8[16384]{0}', space=vmem, size = 0x4000, scoped, tag = 'input window, operand 2']
    #allocation9 [shape = 'u8[16384]{0}', space=vmem, size = 0x4000, scoped, tag = 'input window, operand 3']
    #allocation10 [shape = 's32[2]{0}', space=sflag, size = 0x8, scoped, tag = 'scoped memory for pallas_wkv6.1']
    #allocation11 [shape = 'u8[16384]{0}', space=vmem, size = 0x4000, scoped, tag = 'output window, operand 0']
    %10 = vsyncpa [#allocation4], 0
    %s11 = scalar_lea.sflag [#allocation4], 1
    %12 = vsyncpa %s11, 0
    %13 = vsyncpa [#allocation7], 0
    %s14 = scalar_lea.sflag [#allocation7], 1
    %15 = vsyncpa %s14, 0
    %16 = vsyncpa [#allocation10], 0
    %s17 = scalar_lea.sflag [#allocation10], 1
    %18 = vsyncpa %s17, 0
    %19 = vsyncpa [#allocation5], 0
    %s20 = scalar_lea.sflag [#allocation5], 1
    %21 = vsyncpa %s20, 0
    loop: start=0, step=1, limit=6
    $region2: #{pallas_wkv6.1} parent=1 // loop_pre_header
      _
    $region3: #{pallas_wkv6.1} parent=1 // loop_header
      %s23 = sphi 0, %s27
      %p24 = scmp.ge.s32.totalorder %s23, 6
      %s30 = sphi 0, %s42
      %s31 = sphi 0, %s38
      %s32 = sphi 0, %s30
      %s33 = sphi 0, %s31
      %s34 = sphi 0, %s32
      %s35 = sphi 0, %s33
      %s47 = sphi 0, %s49
      %s50 = sphi 0, %s47
      %s51 = sphi 0, %s50
      %s67 = sphi 0, %s51
      %s75 = sphi 0, %s77
      %s78 = sphi 0, %s75
      %s79 = sphi 0, %s78
      %s95 = sphi 0, %s79
      %s103 = sphi 0, %s105
      %s106 = sphi 0, %s103
      %s107 = sphi 0, %s106
      %s123 = sphi 0, %s107
      %s131 = sphi 0, %s133
      %s134 = sphi 0, %s131
      %s135 = sphi 0, %s134
      %s151 = sphi 0, %s135
      %s155 = sphi 0, %s155
      %s157 = sphi 0, %s155
      %s158 = sphi 0, %s157
      %s172 = sphi 0, %s158
      %s180 = sphi 0, %s182
      %s183 = sphi 0, %s180
      %s184 = sphi 0, %s183
      %s200 = sphi 0, %s184
    $region4: #{pallas_wkv6.1} parent=1 // loop_header_branch
      %26 = sbr.rel (%p24) target = $region8
    $region5: #{pallas_wkv6.1} parent=1 // loop_body
      %s28 = ssub.s32 %s23, 1
      %s29 = ssub.s32 %s23, 2
      %s36 = sadd.s32 1, %s31
      %p37 = scmp.ge.s32.totalorder %s36, 2
      %s38 = scalar_select %p37, 0, %s36
      %s39 = sadd.s32 1, %s30
      %s40 = scalar_select %p37, %s39, %s30
      %p41 = scmp.ge.s32.totalorder %s40, 2
      %s42 = scalar_select %p41, 0, %s40
      %s43 = ssub.s32 %s30, %s42
      %s44 = ssub.s32 %s31, %s38
      %s45 = sor.u32 %s43, %s44
      %p46 = scmp.eq.s32.totalorder %s45, 0
      %s48 = sadd.s32 %s47, 1
      %s49 = scalar_select %p46, %s47, %s48
      %p52 = pneg %p46
      %p53 = scmp.eq.s32.totalorder %s23, 3
      %p54 = por %p52, %p53
      %p55 = scmp.ne.s32.totalorder %s47, %s50
      %p56 = scmp.eq.s32.totalorder %s23, 0
      %p57 = por %p55, %p56
      %p58 = scmp.ne.s32.totalorder %s47, %s50
      %p59 = scmp.eq.s32.totalorder %s28, 3
      %p60 = por %p58, %p59
      %p61 = scmp.ne.s32.totalorder %s50, %s51
      %p62 = scmp.eq.s32.totalorder %s28, 0
      %p63 = por %p61, %p62
      %p64 = scmp.ne.s32.totalorder %s50, %s51
      %p65 = scmp.eq.s32.totalorder %s29, 3
      %p66 = por %p64, %p65
      %p68 = scmp.ne.s32.totalorder %s51, %s67
      %p69 = scmp.eq.s32.totalorder %s29, 0
      %p70 = por %p68, %p69
      %s71 = ssub.s32 %s30, %s42
      %s72 = ssub.s32 %s31, %s38
      %s73 = sor.u32 %s71, %s72
      %p74 = scmp.eq.s32.totalorder %s73, 0
      %s76 = sadd.s32 %s75, 1
      %s77 = scalar_select %p74, %s75, %s76
      %p80 = pneg %p74
      %p81 = scmp.eq.s32.totalorder %s23, 3
      %p82 = por %p80, %p81
      %p83 = scmp.ne.s32.totalorder %s75, %s78
      %p84 = scmp.eq.s32.totalorder %s23, 0
      %p85 = por %p83, %p84
      %p86 = scmp.ne.s32.totalorder %s75, %s78
      %p87 = scmp.eq.s32.totalorder %s28, 3
      %p88 = por %p86, %p87
      %p89 = scmp.ne.s32.totalorder %s78, %s79
      %p90 = scmp.eq.s32.totalorder %s28, 0
      %p91 = por %p89, %p90
      %p92 = scmp.ne.s32.totalorder %s78, %s79
      %p93 = scmp.eq.s32.totalorder %s29, 3
      %p94 = por %p92, %p93
      %p96 = scmp.ne.s32.totalorder %s79, %s95
      %p97 = scmp.eq.s32.totalorder %s29, 0
      %p98 = por %p96, %p97
      %s99 = ssub.s32 %s30, %s42
      %s100 = ssub.s32 %s31, %s38
      %s101 = sor.u32 %s99, %s100
      %p102 = scmp.eq.s32.totalorder %s101, 0
      %s104 = sadd.s32 %s103, 1
      %s105 = scalar_select %p102, %s103, %s104
      %p108 = pneg %p102
      %p109 = scmp.eq.s32.totalorder %s23, 3
      %p110 = por %p108, %p109
      %p111 = scmp.ne.s32.totalorder %s103, %s106
      %p112 = scmp.eq.s32.totalorder %s23, 0
      %p113 = por %p111, %p112
      %p114 = scmp.ne.s32.totalorder %s103, %s106
      %p115 = scmp.eq.s32.totalorder %s28, 3
      %p116 = por %p114, %p115
      %p117 = scmp.ne.s32.totalorder %s106, %s107
      %p118 = scmp.eq.s32.totalorder %s28, 0
      %p119 = por %p117, %p118
      %p120 = scmp.ne.s32.totalorder %s106, %s107
      %p121 = scmp.eq.s32.totalorder %s29, 3
      %p122 = por %p120, %p121
      %p124 = scmp.ne.s32.totalorder %s107, %s123
      %p125 = scmp.eq.s32.totalorder %s29, 0
      %p126 = por %p124, %p125
      %s127 = ssub.s32 %s30, %s42
      %s128 = ssub.s32 %s31, %s38
      %s129 = sor.u32 %s127, %s128
      %p130 = scmp.eq.s32.totalorder %s129, 0
      %s132 = sadd.s32 %s131, 1
      %s133 = scalar_select %p130, %s131, %s132
      %p136 = pneg %p130
      %p137 = scmp.eq.s32.totalorder %s23, 3
      %p138 = por %p136, %p137
      %p139 = scmp.ne.s32.totalorder %s131, %s134
      %p140 = scmp.eq.s32.totalorder %s23, 0
      %p141 = por %p139, %p140
      %p142 = scmp.ne.s32.totalorder %s131, %s134
      %p143 = scmp.eq.s32.totalorder %s28, 3
      %p144 = por %p142, %p143
      %p145 = scmp.ne.s32.totalorder %s134, %s135
      %p146 = scmp.eq.s32.totalorder %s28, 0
      %p147 = por %p145, %p146
      %p148 = scmp.ne.s32.totalorder %s134, %s135
      %p149 = scmp.eq.s32.totalorder %s29, 3
      %p150 = por %p148, %p149
      %p152 = scmp.ne.s32.totalorder %s135, %s151
      %p153 = scmp.eq.s32.totalorder %s29, 0
      %p154 = por %p152, %p153
      %s156 = sadd.s32 %s155, 1
      %p159 = scmp.eq.s32.totalorder %s23, 3
      %p160 = scmp.ne.s32.totalorder %s155, %s157
      %p161 = scmp.eq.s32.totalorder %s23, 0
      %p162 = por %p160, %p161
      %p163 = scmp.ne.s32.totalorder %s155, %s157
      %p164 = scmp.eq.s32.totalorder %s28, 3
      %p165 = por %p163, %p164
      %p166 = scmp.ne.s32.totalorder %s157, %s158
      %p167 = scmp.eq.s32.totalorder %s28, 0
      %p168 = por %p166, %p167
      %p169 = scmp.ne.s32.totalorder %s157, %s158
      %p170 = scmp.eq.s32.totalorder %s29, 3
      %p171 = por %p169, %p170
      %p173 = scmp.ne.s32.totalorder %s158, %s172
      %p174 = scmp.eq.s32.totalorder %s29, 0
      %p175 = por %p173, %p174
      %s176 = ssub.s32 %s30, %s42
      %s177 = ssub.s32 %s31, %s38
      %s178 = sor.u32 %s176, %s177
      %p179 = scmp.eq.s32.totalorder %s178, 0
      %s181 = sadd.s32 %s180, 1
      %s182 = scalar_select %p179, %s180, %s181
      %p185 = pneg %p179
      %p186 = scmp.eq.s32.totalorder %s23, 3
      %p187 = por %p185, %p186
      %p188 = scmp.ne.s32.totalorder %s180, %s183
      %p189 = scmp.eq.s32.totalorder %s23, 0
      %p190 = por %p188, %p189
      %p191 = scmp.ne.s32.totalorder %s180, %s183
      %p192 = scmp.eq.s32.totalorder %s28, 3
      %p193 = por %p191, %p192
      %p194 = scmp.ne.s32.totalorder %s183, %s184
      %p195 = scmp.eq.s32.totalorder %s28, 0
      %p196 = por %p194, %p195
      %p197 = scmp.ne.s32.totalorder %s183, %s184
      %p198 = scmp.eq.s32.totalorder %s29, 3
      %p199 = por %p197, %p198
      %p201 = scmp.ne.s32.totalorder %s184, %s200
      %p202 = scmp.eq.s32.totalorder %s29, 0
      %p203 = por %p201, %p202
      %p204 = scmp.le.s32.totalorder 1, %s23
      %p205 = scmp.lt.s32.totalorder %s23, 5
      %p206 = pnand %p204, %p205
      %p207 = pneg %p206
      // Predicated region
      $region9: #{pallas_wkv6.1} parent=5 // pred_check
        _
      $region10: #{pallas_wkv6.1} parent=5 // pred_check_branch
        %209 = sbr.rel (%p206) target = $region12
      $region11: #{pallas_wkv6.1} parent=5 // pred_region
        %s210 = ssub.s32 %s23, 1
        // Predicated region
        $region13: #{pallas_wkv6.1} parent=11 // pred_check
          %p211 = pneg %p168
        $region14: #{pallas_wkv6.1} parent=11 // pred_check_branch
          %213 = sbr.rel (%p211) target = $region16
        $region15: #{pallas_wkv6.1} parent=11 // pred_region
          _
        $region16: #{pallas_wkv6.1} parent=11 // pred_fallthru
          _
      $region12: #{pallas_wkv6.1} parent=5 // pred_fallthru
        _
      %p214 = scmp.lt.s32.totalorder %s23, 4
      // Predicated region
      $region17: #{pallas_wkv6.1} parent=5 // pred_check
        %p215 = pneg %p214
      $region18: #{pallas_wkv6.1} parent=5 // pred_check_branch
        %217 = sbr.rel (%p215) target = $region20
      $region19: #{pallas_wkv6.1} parent=5 // pred_region
        // Predicated region
        $region21: #{pallas_wkv6.1} parent=19 // pred_check
          %p218 = pneg %p57
        $region22: #{pallas_wkv6.1} parent=19 // pred_check_branch
          %220 = sbr.rel (%p218) target = $region24
        $region23: #{pallas_wkv6.1} parent=19 // pred_region
          %s221 = sand.u32 %s47, 1
          %s222 = scalar_lea.sflag [#allocation4], %s221
          %s223 = sand.u32 %s47, 1
          %s224 = smul.addr %s223, 16
          %s225 = scalar_lea.vmem [#allocation3], %s224
          %s226 = smul.u32 4, %s31
          %228 = vsyncadd %s222, 0
          %s229 = smul.addr %s30, 8
          %s230 = sadd.s32 %s226, %s229
          %s231 = smul.addr %s230, 4
          %s232 = scalar_lea.hbm %s0, %s231
          %s233 = sshll.u32 %s232, 4
          %s234 = int_to_ptr.hbm [resolvable:$true] %s233
          %s235 = sshll.u32 %s225, 4
          %s236 = int_to_ptr.vmem [resolvable:$true] %s235
          %241 = dma.hbm_to_vmem [thread:$0]  %s234, 256, %s236, %s222, 64, 64, 4
        $region24: #{pallas_wkv6.1} parent=19 // pred_fallthru
          _
        // Predicated region
        $region25: #{pallas_wkv6.1} parent=19 // pred_check
          %p242 = pneg %p85
        $region26: #{pallas_wkv6.1} parent=19 // pred_check_branch
          %244 = sbr.rel (%p242) target = $region28
        $region27: #{pallas_wkv6.1} parent=19 // pred_region
          %s245 = sand.u32 %s23, 1
          %s246 = scalar_lea.sflag [#allocation7], %s245
          %s247 = sand.u32 %s75, 1
          %s248 = smul.addr %s247, 16
          %s249 = scalar_lea.vmem [#allocation6], %s248
          %s250 = smul.u32 4, %s31
          %252 = vsyncadd %s246, 0
          %s253 = smul.addr %s30, 8
          %s254 = sadd.s32 %s250, %s253
          %s255 = smul.addr %s254, 4
          %s256 = scalar_lea.hbm %s1, %s255
          %s257 = sshll.u32 %s256, 4
          %s258 = int_to_ptr.hbm [resolvable:$true] %s257
          %s259 = sshll.u32 %s249, 4
          %s260 = int_to_ptr.vmem [resolvable:$true] %s259
          %265 = dma.hbm_to_vmem [thread:$0]  %s258, 256, %s260, %s246, 64, 64, 4
        $region28: #{pallas_wkv6.1} parent=19 // pred_fallthru
          _
        // Predicated region
        $region29: #{pallas_wkv6.1} parent=19 // pred_check
          %p266 = pneg %p113
        $region30: #{pallas_wkv6.1} parent=19 // pred_check_branch
          %268 = sbr.rel (%p266) target = $region32
        $region31: #{pallas_wkv6.1} parent=19 // pred_region
          %s269 = sand.u32 %s23, 1
          %s270 = scalar_lea.sflag [#allocation7], %s269
          %s271 = sand.u32 %s103, 1
          %s272 = smul.addr %s271, 16
          %s273 = scalar_lea.vmem [#allocation8], %s272
          %s274 = smul.u32 4, %s31
          %276 = vsyncadd %s270, 0
          %s277 = smul.addr %s30, 8
          %s278 = sadd.s32 %s274, %s277
          %s279 = smul.addr %s278, 4
          %s280 = scalar_lea.hbm %s2, %s279
          %s281 = sshll.u32 %s280, 4
          %s282 = int_to_ptr.hbm [resolvable:$true] %s281
          %s283 = sshll.u32 %s273, 4
          %s284 = int_to_ptr.vmem [resolvable:$true] %s283
          %289 = dma.hbm_to_vmem [thread:$0]  %s282, 256, %s284, %s270, 64, 64, 4
        $region32: #{pallas_wkv6.1} parent=19 // pred_fallthru
          _
        // Predicated region
        $region33: #{pallas_wkv6.1} parent=19 // pred_check
          %p290 = pneg %p141
        $region34: #{pallas_wkv6.1} parent=19 // pred_check_branch
          %292 = sbr.rel (%p290) target = $region36
        $region35: #{pallas_wkv6.1} parent=19 // pred_region
          %s293 = sand.u32 %s131, 1
          %s294 = scalar_lea.sflag [#allocation10], %s293
          %s295 = sand.u32 %s131, 1
          %s296 = smul.addr %s295, 16
          %s297 = scalar_lea.vmem [#allocation9], %s296
          %s298 = smul.u32 4, %s31
          %300 = vsyncadd %s294, 0
          %s301 = smul.addr %s30, 8
          %s302 = sadd.s32 %s298, %s301
          %s303 = smul.addr %s302, 4
          %s304 = scalar_lea.hbm %s3, %s303
          %s305 = sshll.u32 %s304, 4
          %s306 = int_to_ptr.hbm [resolvable:$true] %s305
          %s307 = sshll.u32 %s297, 4
          %s308 = int_to_ptr.vmem [resolvable:$true] %s307
          %313 = dma.hbm_to_vmem [thread:$0]  %s306, 256, %s308, %s294, 64, 64, 4
        $region36: #{pallas_wkv6.1} parent=19 // pred_fallthru
          _
      $region20: #{pallas_wkv6.1} parent=5 // pred_fallthru
        _
      %p314 = scmp.le.s32.totalorder 1, %s23
      %p315 = scmp.lt.s32.totalorder %s23, 5
      %p316 = pnand %p314, %p315
      %p317 = pneg %p316
      // Predicated region
      $region37: #{pallas_wkv6.1} parent=5 // pred_check
        _
      $region38: #{pallas_wkv6.1} parent=5 // pred_check_branch
        %319 = sbr.rel (%p316) target = $region40
      $region39: #{pallas_wkv6.1} parent=5 // pred_region
        %s320 = ssub.s32 %s23, 1
        %s321 = sand.u32 %s50, 1
        %s322 = scalar_lea.sflag [#allocation4], %s321
        %s323 = sand.u32 %s50, 1
        %s324 = smul.addr %s323, 16
        %s325 = scalar_lea.vmem [#allocation3], %s324
        // Predicated region
        $region41: #{pallas_wkv6.1} parent=39 // pred_check
          %p326 = pneg %p63
        $region42: #{pallas_wkv6.1} parent=39 // pred_check_branch
          %328 = sbr.rel (%p326) target = $region44
        $region43: #{pallas_wkv6.1} parent=39 // pred_region
          %330 = dma.done %s322, 256
        $region44: #{pallas_wkv6.1} parent=39 // pred_fallthru
          _
        %s331 = sand.u32 %s28, 1
        %s332 = scalar_lea.sflag [#allocation7], %s331
        %s333 = sand.u32 %s78, 1
        %s334 = smul.addr %s333, 16
        %s335 = scalar_lea.vmem [#allocation6], %s334
        // Predicated region
        $region45: #{pallas_wkv6.1} parent=39 // pred_check
          %p336 = pneg %p91
        $region46: #{pallas_wkv6.1} parent=39 // pred_check_branch
          %338 = sbr.rel (%p336) target = $region48
        $region47: #{pallas_wkv6.1} parent=39 // pred_region
          %340 = dma.done %s332, 256
        $region48: #{pallas_wkv6.1} parent=39 // pred_fallthru
          _
        %s341 = sand.u32 %s28, 1
        %s342 = scalar_lea.sflag [#allocation7], %s341
        %s343 = sand.u32 %s106, 1
        %s344 = smul.addr %s343, 16
        %s345 = scalar_lea.vmem [#allocation8], %s344
        // Predicated region
        $region49: #{pallas_wkv6.1} parent=39 // pred_check
          %p346 = pneg %p119
        $region50: #{pallas_wkv6.1} parent=39 // pred_check_branch
          %348 = sbr.rel (%p346) target = $region52
        $region51: #{pallas_wkv6.1} parent=39 // pred_region
          %350 = dma.done %s342, 256
        $region52: #{pallas_wkv6.1} parent=39 // pred_fallthru
          _
        %s351 = sand.u32 %s134, 1
        %s352 = scalar_lea.sflag [#allocation10], %s351
        %s353 = sand.u32 %s134, 1
        %s354 = smul.addr %s353, 16
        %s355 = scalar_lea.vmem [#allocation9], %s354
        // Predicated region
        $region53: #{pallas_wkv6.1} parent=39 // pred_check
          %p356 = pneg %p147
        $region54: #{pallas_wkv6.1} parent=39 // pred_check_branch
          %358 = sbr.rel (%p356) target = $region56
        $region55: #{pallas_wkv6.1} parent=39 // pred_region
          %360 = dma.done %s352, 256
        $region56: #{pallas_wkv6.1} parent=39 // pred_fallthru
          _
        %s361 = sand.u32 %s50, 1
        %s362 = scalar_lea.sflag [#allocation4], %s361
        %s363 = sand.u32 %s50, 1
        %s364 = smul.addr %s363, 16
        %s365 = scalar_lea.vmem [#allocation3], %s364
        %p366 = pneg %p63
        %p367 = pneg %p60
        %s368 = sand.u32 %s28, 1
        %s369 = scalar_lea.sflag [#allocation7], %s368
        %s370 = sand.u32 %s78, 1
        %s371 = smul.addr %s370, 16
        %s372 = scalar_lea.vmem [#allocation6], %s371
        %p373 = pneg %p91
        %p374 = pneg %p88
        %s375 = sand.u32 %s28, 1
        %s376 = scalar_lea.sflag [#allocation7], %s375
        %s377 = sand.u32 %s106, 1
        %s378 = smul.addr %s377, 16
        %s379 = scalar_lea.vmem [#allocation8], %s378
        %p380 = pneg %p119
        %p381 = pneg %p116
        %s382 = sand.u32 %s134, 1
        %s383 = scalar_lea.sflag [#allocation10], %s382
        %s384 = sand.u32 %s134, 1
        %s385 = smul.addr %s384, 16
        %s386 = scalar_lea.vmem [#allocation9], %s385
        %p387 = pneg %p147
        %p388 = pneg %p144
        %p389 = pneg %p168
        %p390 = pneg %p165
        %p391 = pneg %p196
        %p392 = pneg %p193
        %s393 = sand.u32 %s183, 1
        %s394 = scalar_lea.sflag [#allocation5], %s393
        %s395 = sand.u32 %s183, 1
        %s396 = smul.addr %s395, 16
        %s397 = scalar_lea.vmem [#allocation11], %s396
        %s398 = smul.u32 4, %s33
        %s399 = smul.u32 4, %s33
        %s400 = smul.u32 4, %s33
        %s401 = smul.u32 4, %s33
        %s402 = smul.u32 4, %s33
        %p403 = scmp.eq.s32.totalorder %s33, 0
        // Predicated region
        $region57: #{pallas_wkv6.1} parent=39 // pred_check
          %p404 = pneg %p403
        $region58: #{pallas_wkv6.1} parent=39 // pred_check_branch
          %406 = sbr.rel (%p404) target = $region60
        $region59: #{pallas_wkv6.1} parent=39 // pred_region
          %vm407 = vcmask 523264
          %408 = vst.msk [vmem:[#allocation2] sm:$0xff] %vm407, 0.0
          %409 = vst.msk [vmem:[#allocation2 + $0x8] sm:$0xff] %vm407, 0.0
          %410 = vst.msk [vmem:[#allocation2 + $0x10] sm:$0xff] %vm407, 0.0
          %411 = vst.msk [vmem:[#allocation2 + $0x18] sm:$0xff] %vm407, 0.0
          %412 = vst.msk [vmem:[#allocation2 + $0x20] sm:$0xff] %vm407, 0.0
          %413 = vst.msk [vmem:[#allocation2 + $0x28] sm:$0xff] %vm407, 0.0
          %414 = vst.msk [vmem:[#allocation2 + $0x30] sm:$0xff] %vm407, 0.0
          %415 = vst.msk [vmem:[#allocation2 + $0x38] sm:$0xff] %vm407, 0.0
          %416 = vst.msk [vmem:[#allocation2 + $0x40] sm:$0xff] %vm407, 0.0
          %417 = vst.msk [vmem:[#allocation2 + $0x48] sm:$0xff] %vm407, 0.0
          %418 = vst.msk [vmem:[#allocation2 + $0x50] sm:$0xff] %vm407, 0.0
          %419 = vst.msk [vmem:[#allocation2 + $0x58] sm:$0xff] %vm407, 0.0
          %420 = vst.msk [vmem:[#allocation2 + $0x60] sm:$0xff] %vm407, 0.0
          %421 = vst.msk [vmem:[#allocation2 + $0x68] sm:$0xff] %vm407, 0.0
          %422 = vst.msk [vmem:[#allocation2 + $0x70] sm:$0xff] %vm407, 0.0
          %423 = vst.msk [vmem:[#allocation2 + $0x78] sm:$0xff] %vm407, 0.0
        $region60: #{pallas_wkv6.1} parent=39 // pred_fallthru
          _
        %v424 = vld [vmem:[%s325] sm:$0xf]
        %v425 = vld [vmem:[%s325 + $0x4] sm:$0xf]
        %v426 = vld [vmem:[%s325 + $0x8] sm:$0xf]
        %v427 = vld [vmem:[%s325 + $0xc] sm:$0xf]
        %v428 = vunpack.c.l.bf16 %v424
        %v429 = vunpack.c.l.bf16 %v425
        %v430 = vunpack.c.l.bf16 %v426
        %v431 = vunpack.c.l.bf16 %v427
        %v432 = vld [vmem:[%s335] sm:$0xf]
        %v433 = vld [vmem:[%s335 + $0x4] sm:$0xf]
        %v434 = vld [vmem:[%s335 + $0x8] sm:$0xf]
        %v435 = vld [vmem:[%s335 + $0xc] sm:$0xf]
        %v436 = vunpack.c.l.bf16 %v432
        %v437 = vunpack.c.l.bf16 %v433
        %v438 = vunpack.c.l.bf16 %v434
        %v439 = vunpack.c.l.bf16 %v435
        %v440 = vld [vmem:[%s345] sm:$0xf]
        %v441 = vld [vmem:[%s345 + $0x4] sm:$0xf]
        %v442 = vld [vmem:[%s345 + $0x8] sm:$0xf]
        %v443 = vld [vmem:[%s345 + $0xc] sm:$0xf]
        %v444 = vunpack.c.l.bf16 %v440
        %v445 = vunpack.c.l.bf16 %v441
        %v446 = vunpack.c.l.bf16 %v442
        %v447 = vunpack.c.l.bf16 %v443
        %v448 = vld [vmem:[%s355] sm:$0xf]
        %v449 = vld [vmem:[%s355 + $0x4] sm:$0xf]
        %v450 = vld [vmem:[%s355 + $0x8] sm:$0xf]
        %v451 = vld [vmem:[%s355 + $0xc] sm:$0xf]
        %v452 = vunpack.c.l.bf16 %v448
        %v453 = vunpack.c.l.bf16 %v449
        %v454 = vunpack.c.l.bf16 %v450
        %v455 = vunpack.c.l.bf16 %v451
        %v456 = vld [vmem:[%s4] sm:$0x1]
        %v457 = vunpack.c.l.bf16 %v456
        %v458 = vmul.f32 %v452, 1.442695
        %v459 = vpow.pop %v458
        %v460 = vmul.f32 %v453, 1.442695
        %v461 = vpow.pop %v460
        %v462 = vmul.f32 %v454, 1.442695
        %v463 = vpow.pop %v462
        %v464 = vmul.f32 %v455, 1.442695
        %v465 = vpow.pop %v464
        %v466 = vsub.f32 0.0, %v459
        %v467 = vsub.f32 0.0, %v461
        %v468 = vsub.f32 0.0, %v463
        %v469 = vsub.f32 0.0, %v465
        %v470 = vlaneseq
        %v471 = vshrl.u32 %v470, 7
        %v472 = vadd.s32 %v471, 8
        %v473 = vadd.s32 %v471, 16
        %v474 = vadd.s32 %v471, 24
        %v475 = vlaneseq
        %v476 = vand.u32 %v475, 127
        %vm477 = vcmp.le.s32.totalorder %v476, %v471
        %vm478 = vcmp.le.s32.totalorder %v476, %v472
        %vm479 = vcmp.le.s32.totalorder %v476, %v473
        %vm480 = vcmp.le.s32.totalorder %v476, %v474
        %v481 = vsel %vm477, 1.0, 0.0
        %v482 = vsel %vm478, 1.0, 0.0
        %v483 = vsel %vm479, 1.0, 0.0
        %v484 = vsel %vm480, 1.0, 0.0
        %vm485 = vcmp.lt.s32.totalorder %v476, %v471
        %vm486 = vcmp.lt.s32.totalorder %v476, %v472
        %vm487 = vcmp.lt.s32.totalorder %v476, %v473
        %vm488 = vcmp.lt.s32.totalorder %v476, %v474
        %vm489 = vcmask 261120
        %v491 = vsel %vm489, %v481, 0
        %v494 = vsel %vm489, %v482, 0
        %v497 = vsel %vm489, %v483, 0
        %v500 = vsel %vm489, %v484, 0
        %502 = vmatpush.msra.mxu0 0.0
        %503 = vmatpush.msra.mxu0 0.0
        %504 = vmatpush.msra.mxu0 0.0
        %505 = vmatpush.msra.mxu0 0.0
        %506 = vmatpush.msra.mxu0 0.0
        %507 = vmatpush.msra.mxu0 0.0
        %508 = vmatpush.msra.mxu0 0.0
        %509 = vmatpush.msra.mxu0 0.0
        %510 = vmatpush.msra.mxu0 0.0
        %511 = vmatpush.msra.mxu0 0.0
        %512 = vmatpush.msra.mxu0 0.0
        %513 = vmatpush.msra.mxu0 0.0
        %514 = vmatpush.msra.mxu0 %v469
        %515 = vmatpush.msra.mxu0 %v468
        %516 = vmatpush.msra.mxu0 %v467
        %517 = vmatpush.msra.mxu0 %v466
        %518 = vmatmul.f32.gmra.mxu0 %v491
        %v519 = vpop.f32.mrf.mxu0
        %v520 = vadd.f32 0.0, %v519
        %521 = vmatmul.f32.gmra.mxu0 %v494
        %v522 = vpop.f32.mrf.mxu0
        %v523 = vadd.f32 0.0, %v522
        %524 = vmatmul.f32.gmra.mxu0 %v497
        %v525 = vpop.f32.mrf.mxu0
        %v526 = vadd.f32 0.0, %v525
        %527 = vmatmul.f32.gmra.mxu0 %v500
        %v528 = vpop.f32.mrf.mxu0
        %v529 = vadd.f32 0.0, %v528
        %530 = vdwg.mxu0
        %v531 = vsub.f32 %v520, %v466
        %v532 = vsub.f32 %v523, %v467
        %v533 = vsub.f32 %v526, %v468
        %v534 = vsub.f32 %v529, %v469
        %v535 = vmul.f32 %v531, 1.442695
        %v536 = vpow.pop %v535
        %v537 = vmul.f32 %v532, 1.442695
        %v538 = vpow.pop %v537
        %v539 = vmul.f32 %v533, 1.442695
        %v540 = vpow.pop %v539
        %v541 = vmul.f32 %v534, 1.442695
        %v542 = vpow.pop %v541
        %v543 = vmul.f32 %v428, %v536
        %v544 = vmul.f32 %v429, %v538
        %v545 = vmul.f32 %v430, %v540
        %v546 = vmul.f32 %v431, %v542
        %v547 = vsub.f32 0.0, %v520
        %v548 = vsub.f32 0.0, %v523
        %v549 = vsub.f32 0.0, %v526
        %v550 = vsub.f32 0.0, %v529
        %v551 = vmul.f32 %v547, 1.442695
        %v552 = vpow.pop %v551
        %v553 = vmul.f32 %v548, 1.442695
        %v554 = vpow.pop %v553
        %v555 = vmul.f32 %v549, 1.442695
        %v556 = vpow.pop %v555
        %v557 = vmul.f32 %v550, 1.442695
        %v558 = vpow.pop %v557
        %v559 = vmul.f32 %v436, %v552
        %v560 = vmul.f32 %v437, %v554
        %v561 = vmul.f32 %v438, %v556
        %v562 = vmul.f32 %v439, %v558
        %v563 = vperm.slane %v529, 7
        %v564 = vsub.f32 %v563, %v520
        %v565 = vsub.f32 %v563, %v523
        %v566 = vsub.f32 %v563, %v526
        %v567 = vsub.f32 %v563, %v529
        %v568 = vmul.f32 %v564, 1.442695
        %v569 = vpow.pop %v568
        %v570 = vmul.f32 %v565, 1.442695
        %v571 = vpow.pop %v570
        %v572 = vmul.f32 %v566, 1.442695
        %v573 = vpow.pop %v572
        %v574 = vmul.f32 %v567, 1.442695
        %v575 = vpow.pop %v574
        %v576 = vmul.f32 %v436, %v569
        %v577 = vmul.f32 %v437, %v571
        %v578 = vmul.f32 %v438, %v573
        %v579 = vmul.f32 %v439, %v575
        %v580 = vperm.slane %v457, 0
        %v581 = vmul.f32 %v428, %v580
        %v582 = vmul.f32 %v429, %v580
        %v583 = vmul.f32 %v430, %v580
        %v584 = vmul.f32 %v431, %v580
        %v585 = vmul.f32 %v581, %v436
        %v586 = vmul.f32 %v582, %v437
        %v587 = vmul.f32 %v583, %v438
        %v588 = vmul.f32 %v584, %v439
        %v589 = vld [vmem:[#allocation2] sm:$0xff]
        %v590 = vld [vmem:[#allocation2 + $0x8] sm:$0xff]
        %v591 = vld [vmem:[#allocation2 + $0x10] sm:$0xff]
        %v592 = vld [vmem:[#allocation2 + $0x18] sm:$0xff]
        %v593 = vld [vmem:[#allocation2 + $0x20] sm:$0xff]
        %v594 = vld [vmem:[#allocation2 + $0x28] sm:$0xff]
        %v595 = vld [vmem:[#allocation2 + $0x30] sm:$0xff]
        %v596 = vld [vmem:[#allocation2 + $0x38] sm:$0xff]
        %vm597 = vcmask 523264
        %v599 = vsel %vm597, %v543, 0
        %v602 = vsel %vm597, %v544, 0
        %v605 = vsel %vm597, %v545, 0
        %v608 = vsel %vm597, %v546, 0
        %v611 = vsel %vm597, %v559, 0
        %v614 = vsel %vm597, %v560, 0
        %v617 = vsel %vm597, %v561, 0
        %v620 = vsel %vm597, %v562, 0
        %622 = vmatpush.xpose.msra.mxu0 0.0
        %623 = vmatpush.xpose.msra.mxu0 0.0
        %624 = vmatpush.xpose.msra.mxu0 0.0
        %625 = vmatpush.xpose.msra.mxu0 0.0
        %626 = vmatpush.xpose.msra.mxu0 0.0
        %627 = vmatpush.xpose.msra.mxu0 0.0
        %628 = vmatpush.xpose.msra.mxu0 0.0
        %629 = vmatpush.xpose.msra.mxu0 0.0
        %630 = vmatpush.xpose.msra.mxu0 0.0
        %631 = vmatpush.xpose.msra.mxu0 0.0
        %632 = vmatpush.xpose.msra.mxu0 0.0
        %633 = vmatpush.xpose.msra.mxu0 0.0
        %634 = vmatpush.xpose.msra.mxu0 %v620
        %635 = vmatpush.xpose.msra.mxu0 %v617
        %636 = vmatpush.xpose.msra.mxu0 %v614
        %637 = vmatpush.xpose.msra.mxu0 %v611
        %638 = vmatmul.f32.gmra.mxu0 %v599
        %v639 = vpop.f32.mrf.mxu0
        %v640 = vadd.f32 0.0, %v639
        %641 = vmatmul.f32.gmra.mxu0 %v602
        %v642 = vpop.f32.mrf.mxu0
        %v643 = vadd.f32 0.0, %v642
        %644 = vmatmul.f32.gmra.mxu0 %v605
        %v645 = vpop.f32.mrf.mxu0
        %v646 = vadd.f32 0.0, %v645
        %647 = vmatmul.f32.gmra.mxu0 %v608
        %v648 = vpop.f32.mrf.mxu0
        %v649 = vadd.f32 0.0, %v648
        %650 = vdwg.mxu0
        %v651 = vsel %vm485, %v640, 0.0
        %v652 = vsel %vm486, %v643, 0.0
        %v653 = vsel %vm487, %v646, 0.0
        %v654 = vsel %vm488, %v649, 0.0
        %v655 = vsel %vm597, %v585, 0.0
        %656 = vadd.xlane.f32.xlu0 %v655
        %v657 = vpop.xlane.xlu0 %656
        %v658 = vsel %vm597, %v586, 0.0
        %659 = vadd.xlane.f32.xlu0 %v658
        %v660 = vpop.xlane.xlu0 %659
        %v661 = vsel %vm597, %v587, 0.0
        %662 = vadd.xlane.f32.xlu0 %v661
        %v663 = vpop.xlane.xlu0 %662
        %v664 = vsel %vm597, %v588, 0.0
        %665 = vadd.xlane.f32.xlu0 %v664
        %v666 = vpop.xlane.xlu0 %665
        %v668 = vsel %vm489, %v651, 0
        %v671 = vsel %vm489, %v652, 0
        %v674 = vsel %vm489, %v653, 0
        %v677 = vsel %vm489, %v654, 0
        %679 = vmatpush.msra.mxu0 0.0
        %680 = vmatpush.msra.mxu0 0.0
        %681 = vmatpush.msra.mxu0 0.0
        %682 = vmatpush.msra.mxu0 0.0
        %683 = vmatpush.msra.mxu0 0.0
        %684 = vmatpush.msra.mxu0 0.0
        %685 = vmatpush.msra.mxu0 0.0
        %686 = vmatpush.msra.mxu0 0.0
        %687 = vmatpush.msra.mxu0 0.0
        %688 = vmatpush.msra.mxu0 0.0
        %689 = vmatpush.msra.mxu0 0.0
        %690 = vmatpush.msra.mxu0 0.0
        %691 = vmatpush.msra.mxu0 %v447
        %692 = vmatpush.msra.mxu0 %v446
        %693 = vmatpush.msra.mxu0 %v445
        %694 = vmatpush.msra.mxu0 %v444
        %695 = vmatmul.f32.gmra.mxu0 %v668
        %v696 = vpop.f32.mrf.mxu0
        %v697 = vadd.f32 0.0, %v696
        %698 = vmatmul.f32.gmra.mxu0 %v671
        %v699 = vpop.f32.mrf.mxu0
        %v700 = vadd.f32 0.0, %v699
        %701 = vmatmul.f32.gmra.mxu0 %v674
        %v702 = vpop.f32.mrf.mxu0
        %v703 = vadd.f32 0.0, %v702
        %704 = vmatmul.f32.gmra.mxu0 %v677
        %v705 = vpop.f32.mrf.mxu0
        %v706 = vadd.f32 0.0, %v705
        %707 = vdwg.mxu0
        %708 = vmatpush.msra.mxu0 0.0
        %709 = vmatpush.msra.mxu0 0.0
        %710 = vmatpush.msra.mxu0 0.0
        %711 = vmatpush.msra.mxu0 0.0
        %712 = vmatpush.msra.mxu0 0.0
        %713 = vmatpush.msra.mxu0 0.0
        %714 = vmatpush.msra.mxu0 0.0
        %715 = vmatpush.msra.mxu0 0.0
        %716 = vmatpush.msra.mxu0 %v596
        %717 = vmatpush.msra.mxu0 %v595
        %718 = vmatpush.msra.mxu0 %v594
        %719 = vmatpush.msra.mxu0 %v593
        %720 = vmatpush.msra.mxu0 %v592
        %721 = vmatpush.msra.mxu0 %v591
        %722 = vmatpush.msra.mxu0 %v590
        %723 = vmatpush.msra.mxu0 %v589
        %724 = vmatmul.f32.gmra.mxu0 %v599
        %v725 = vpop.f32.mrf.mxu0
        %v726 = vadd.f32 %v697, %v725
        %727 = vmatmul.f32.gmra.mxu0 %v602
        %v728 = vpop.f32.mrf.mxu0
        %v729 = vadd.f32 %v700, %v728
        %730 = vmatmul.f32.gmra.mxu0 %v605
        %v731 = vpop.f32.mrf.mxu0
        %v732 = vadd.f32 %v703, %v731
        %733 = vmatmul.f32.gmra.mxu0 %v608
        %v734 = vpop.f32.mrf.mxu0
        %v735 = vadd.f32 %v706, %v734
        %736 = vdwg.mxu0
        %v737 = vmul.f32 %v657, %v444
        %v738 = vmul.f32 %v660, %v445
        %v739 = vmul.f32 %v663, %v446
        %v740 = vmul.f32 %v666, %v447
        %v741 = vadd.f32 %v726, %v737
        %v742 = vadd.f32 %v729, %v738
        %v743 = vadd.f32 %v732, %v739
        %v744 = vadd.f32 %v735, %v740
        %v745 = vmul.f32 %v529, 1.442695
        %v746 = vpow.pop %v745
        %747 = vxpose.xlu0.b32.start [1/16] %v576, 128
        %748 = vxpose.xlu0.b32.cont [2/16] %v577, 128
        %749 = vxpose.xlu0.b32.cont [3/16] %v578, 128
        %750 = vxpose.xlu0.b32.cont [4/16] %v579, 128
        %751 = vxpose.xlu0.b32.cont [5/16] 0.0, 128
        %752 = vxpose.xlu0.b32.cont [6/16] 0.0, 128
        %753 = vxpose.xlu0.b32.cont [7/16] 0.0, 128
        %754 = vxpose.xlu0.b32.cont [8/16] 0.0, 128
        %755 = vxpose.xlu0.b32.cont [9/16] 0.0, 128
        %756 = vxpose.xlu0.b32.cont [10/16] 0.0, 128
        %757 = vxpose.xlu0.b32.cont [11/16] 0.0, 128
        %758 = vxpose.xlu0.b32.cont [12/16] 0.0, 128
        %759 = vxpose.xlu0.b32.cont [13/16] 0.0, 128
        %760 = vxpose.xlu0.b32.cont [14/16] 0.0, 128
        %761 = vxpose.xlu0.b32.cont [15/16] 0.0, 128
        %762 = vxpose.xlu0.b32.end [16/16] 0.0, 128
        %v763 = vpop.trf.xlu0
        %v764 = vpop.trf.xlu0
        %v765 = vpop.trf.xlu0
        %v766 = vpop.trf.xlu0
        %v767 = vpop.trf.xlu0
        %v768 = vpop.trf.xlu0
        %v769 = vpop.trf.xlu0
        %v770 = vpop.trf.xlu0
        %v771 = vpop.trf.xlu0
        %v772 = vpop.trf.xlu0
        %v773 = vpop.trf.xlu0
        %v774 = vpop.trf.xlu0
        %v775 = vpop.trf.xlu0
        %v776 = vpop.trf.xlu0
        %v777 = vpop.trf.xlu0
        %v778 = vpop.trf.xlu0
        %v780 = vsel %vm489, %v763, 0
        %v783 = vsel %vm489, %v764, 0
        %v786 = vsel %vm489, %v765, 0
        %v789 = vsel %vm489, %v766, 0
        %v792 = vsel %vm489, %v767, 0
        %v795 = vsel %vm489, %v768, 0
        %v798 = vsel %vm489, %v769, 0
        %v801 = vsel %vm489, %v770, 0
        %803 = vmatpush.msra.mxu0 0.0
        %804 = vmatpush.msra.mxu0 0.0
        %805 = vmatpush.msra.mxu0 0.0
        %806 = vmatpush.msra.mxu0 0.0
        %807 = vmatpush.msra.mxu0 0.0
        %808 = vmatpush.msra.mxu0 0.0
        %809 = vmatpush.msra.mxu0 0.0
        %810 = vmatpush.msra.mxu0 0.0
        %811 = vmatpush.msra.mxu0 0.0
        %812 = vmatpush.msra.mxu0 0.0
        %813 = vmatpush.msra.mxu0 0.0
        %814 = vmatpush.msra.mxu0 0.0
        %815 = vmatpush.msra.mxu0 %v447
        %816 = vmatpush.msra.mxu0 %v446
        %817 = vmatpush.msra.mxu0 %v445
        %818 = vmatpush.msra.mxu0 %v444
        %819 = vmatmul.f32.gmra.mxu0 %v780
        %v820 = vpop.f32.mrf.mxu0
        %v821 = vadd.f32 0.0, %v820
        %822 = vmatmul.f32.gmra.mxu0 %v783
        %v823 = vpop.f32.mrf.mxu0
        %v824 = vadd.f32 0.0, %v823
        %825 = vmatmul.f32.gmra.mxu0 %v786
        %v826 = vpop.f32.mrf.mxu0
        %v827 = vadd.f32 0.0, %v826
        %828 = vmatmul.f32.gmra.mxu0 %v789
        %v829 = vpop.f32.mrf.mxu0
        %v830 = vadd.f32 0.0, %v829
        %831 = vmatmul.f32.gmra.mxu0 %v792
        %v832 = vpop.f32.mrf.mxu0
        %v833 = vadd.f32 0.0, %v832
        %834 = vmatmul.f32.gmra.mxu0 %v795
        %v835 = vpop.f32.mrf.mxu0
        %v836 = vadd.f32 0.0, %v835
        %837 = vmatmul.f32.gmra.mxu0 %v798
        %v838 = vpop.f32.mrf.mxu0
        %v839 = vadd.f32 0.0, %v838
        %840 = vmatmul.f32.gmra.mxu0 %v801
        %v841 = vpop.f32.mrf.mxu0
        %v842 = vadd.f32 0.0, %v841
        %843 = vdwg.mxu0
        %v845 = vrot.slane %v746, 7
        %847 = vxpose.xlu0.b32.start [1/16] %v845, 128
        %848 = vxpose.xlu0.b32.cont [2/16] 0.0, 128
        %849 = vxpose.xlu0.b32.cont [3/16] 0.0, 128
        %850 = vxpose.xlu0.b32.cont [4/16] 0.0, 128
        %851 = vxpose.xlu0.b32.cont [5/16] 0.0, 128
        %852 = vxpose.xlu0.b32.cont [6/16] 0.0, 128
        %853 = vxpose.xlu0.b32.cont [7/16] 0.0, 128
        %854 = vxpose.xlu0.b32.cont [8/16] 0.0, 128
        %855 = vxpose.xlu0.b32.cont [9/16] 0.0, 128
        %856 = vxpose.xlu0.b32.cont [10/16] 0.0, 128
        %857 = vxpose.xlu0.b32.cont [11/16] 0.0, 128
        %858 = vxpose.xlu0.b32.cont [12/16] 0.0, 128
        %859 = vxpose.xlu0.b32.cont [13/16] 0.0, 128
        %860 = vxpose.xlu0.b32.cont [14/16] 0.0, 128
        %861 = vxpose.xlu0.b32.cont [15/16] 0.0, 128
        %862 = vxpose.xlu0.b32.end [16/16] 0.0, 128
        %v863 = vpop.trf.xlu0
        %v864 = vpop.trf.xlu0
        %v865 = vpop.trf.xlu0
        %v866 = vpop.trf.xlu0
        %v867 = vpop.trf.xlu0
        %v868 = vpop.trf.xlu0
        %v869 = vpop.trf.xlu0
        %v870 = vpop.trf.xlu0
        %v871 = vpop.trf.xlu0
        %v872 = vpop.trf.xlu0
        %v873 = vpop.trf.xlu0
        %v874 = vpop.trf.xlu0
        %v875 = vpop.trf.xlu0
        %v876 = vpop.trf.xlu0
        %v877 = vpop.trf.xlu0
        %v878 = vpop.trf.xlu0
        %880 = vset.pattern.permute.xlu0 0
        %881 = vperm.xlu0 %880, %v863
        %v882 = vpop.permute.xlu0 %881
        %885 = vset.pattern.permute.xlu0 0
        %886 = vperm.xlu0 %885, %v864
        %v887 = vpop.permute.xlu0 %886
        %890 = vset.pattern.permute.xlu0 0
        %891 = vperm.xlu0 %890, %v865
        %v892 = vpop.permute.xlu0 %891
        %895 = vset.pattern.permute.xlu0 0
        %896 = vperm.xlu0 %895, %v866
        %v897 = vpop.permute.xlu0 %896
        %900 = vset.pattern.permute.xlu0 0
        %901 = vperm.xlu0 %900, %v867
        %v902 = vpop.permute.xlu0 %901
        %905 = vset.pattern.permute.xlu0 0
        %906 = vperm.xlu0 %905, %v868
        %v907 = vpop.permute.xlu0 %906
        %910 = vset.pattern.permute.xlu0 0
        %911 = vperm.xlu0 %910, %v869
        %v912 = vpop.permute.xlu0 %911
        %915 = vset.pattern.permute.xlu0 0
        %916 = vperm.xlu0 %915, %v870
        %v917 = vpop.permute.xlu0 %916
        %v919 = vmul.f32 %v589, %v882
        %v920 = vmul.f32 %v590, %v887
        %v921 = vmul.f32 %v591, %v892
        %v922 = vmul.f32 %v592, %v897
        %v923 = vmul.f32 %v593, %v902
        %v924 = vmul.f32 %v594, %v907
        %v925 = vmul.f32 %v595, %v912
        %v926 = vmul.f32 %v596, %v917
        %v927 = vadd.f32 %v919, %v821
        %v928 = vadd.f32 %v920, %v824
        %v929 = vadd.f32 %v921, %v827
        %v930 = vadd.f32 %v922, %v830
        %v931 = vadd.f32 %v923, %v833
        %v932 = vadd.f32 %v924, %v836
        %v933 = vadd.f32 %v925, %v839
        %v934 = vadd.f32 %v926, %v842
        %935 = vst.msk [vmem:[#allocation2] sm:$0xff] %vm597, %v927
        %936 = vst.msk [vmem:[#allocation2 + $0x8] sm:$0xff] %vm597, %v928
        %937 = vst.msk [vmem:[#allocation2 + $0x10] sm:$0xff] %vm597, %v929
        %938 = vst.msk [vmem:[#allocation2 + $0x18] sm:$0xff] %vm597, %v930
        %939 = vst.msk [vmem:[#allocation2 + $0x20] sm:$0xff] %vm597, %v931
        %940 = vst.msk [vmem:[#allocation2 + $0x28] sm:$0xff] %vm597, %v932
        %941 = vst.msk [vmem:[#allocation2 + $0x30] sm:$0xff] %vm597, %v933
        %942 = vst.msk [vmem:[#allocation2 + $0x38] sm:$0xff] %vm597, %v934
        %s943 = scalar_lea.vmem [#allocation2], 64
        %v944 = vld [vmem:[%s943] sm:$0xff]
        %v945 = vld [vmem:[%s943 + $0x8] sm:$0xff]
        %v946 = vld [vmem:[%s943 + $0x10] sm:$0xff]
        %v947 = vld [vmem:[%s943 + $0x18] sm:$0xff]
        %v948 = vld [vmem:[%s943 + $0x20] sm:$0xff]
        %v949 = vld [vmem:[%s943 + $0x28] sm:$0xff]
        %v950 = vld [vmem:[%s943 + $0x30] sm:$0xff]
        %v951 = vld [vmem:[%s943 + $0x38] sm:$0xff]
        %952 = vrot.lane.b32.xlu0 %v543, 64
        %v953 = vpop.permute.xlu0 %952
        %954 = vrot.lane.b32.xlu0 %v544, 64
        %v955 = vpop.permute.xlu0 %954
        %956 = vrot.lane.b32.xlu0 %v545, 64
        %v957 = vpop.permute.xlu0 %956
        %958 = vrot.lane.b32.xlu0 %v546, 64
        %v959 = vpop.permute.xlu0 %958
        %960 = vrot.lane.b32.xlu0 %v559, 64
        %v961 = vpop.permute.xlu0 %960
        %962 = vrot.lane.b32.xlu0 %v560, 64
        %v963 = vpop.permute.xlu0 %962
        %964 = vrot.lane.b32.xlu0 %v561, 64
        %v965 = vpop.permute.xlu0 %964
        %966 = vrot.lane.b32.xlu0 %v562, 64
        %v967 = vpop.permute.xlu0 %966
        %v968 = vsel %vm597, %v953, 0
        %v970 = vsel %vm597, %v955, 0
        %v972 = vsel %vm597, %v957, 0
        %v974 = vsel %vm597, %v959, 0
        %v976 = vsel %vm597, %v961, 0
        %v978 = vsel %vm597, %v963, 0
        %v980 = vsel %vm597, %v965, 0
        %v982 = vsel %vm597, %v967, 0
        %984 = vmatpush.xpose.msra.mxu0 0.0
        %985 = vmatpush.xpose.msra.mxu0 0.0
        %986 = vmatpush.xpose.msra.mxu0 0.0
        %987 = vmatpush.xpose.msra.mxu0 0.0
        %988 = vmatpush.xpose.msra.mxu0 0.0
        %989 = vmatpush.xpose.msra.mxu0 0.0
        %990 = vmatpush.xpose.msra.mxu0 0.0
        %991 = vmatpush.xpose.msra.mxu0 0.0
        %992 = vmatpush.xpose.msra.mxu0 0.0
        %993 = vmatpush.xpose.msra.mxu0 0.0
        %994 = vmatpush.xpose.msra.mxu0 0.0
        %995 = vmatpush.xpose.msra.mxu0 0.0
        %996 = vmatpush.xpose.msra.mxu0 %v982
        %997 = vmatpush.xpose.msra.mxu0 %v980
        %998 = vmatpush.xpose.msra.mxu0 %v978
        %999 = vmatpush.xpose.msra.mxu0 %v976
        %1000 = vmatmul.f32.gmra.mxu0 %v968
        %v1001 = vpop.f32.mrf.mxu0
        %v1002 = vadd.f32 0.0, %v1001
        %1003 = vmatmul.f32.gmra.mxu0 %v970
        %v1004 = vpop.f32.mrf.mxu0
        %v1005 = vadd.f32 0.0, %v1004
        %1006 = vmatmul.f32.gmra.mxu0 %v972
        %v1007 = vpop.f32.mrf.mxu0
        %v1008 = vadd.f32 0.0, %v1007
        %1009 = vmatmul.f32.gmra.mxu0 %v974
        %v1010 = vpop.f32.mrf.mxu0
        %v1011 = vadd.f32 0.0, %v1010
        %1012 = vdwg.mxu0
        %v1013 = vsel %vm485, %v1002, 0.0
        %v1014 = vsel %vm486, %v1005, 0.0
        %v1015 = vsel %vm487, %v1008, 0.0
        %v1016 = vsel %vm488, %v1011, 0.0
        %1021 = vrot.lane.b32.xlu0 %v585, 64
        %v1022 = vpop.permute.xlu0 %1021
        %1023 = vrot.lane.b32.xlu0 %v586, 64
        %v1024 = vpop.permute.xlu0 %1023
        %1025 = vrot.lane.b32.xlu0 %v587, 64
        %v1026 = vpop.permute.xlu0 %1025
        %1027 = vrot.lane.b32.xlu0 %v588, 64
        %v1028 = vpop.permute.xlu0 %1027
        %v1033 = vsel %vm597, %v1022, 0.0
        %1034 = vadd.xlane.f32.xlu0 %v1033
        %v1035 = vpop.xlane.xlu0 %1034
        %v1036 = vsel %vm597, %v1024, 0.0
        %1037 = vadd.xlane.f32.xlu0 %v1036
        %v1038 = vpop.xlane.xlu0 %1037
        %v1039 = vsel %vm597, %v1026, 0.0
        %1040 = vadd.xlane.f32.xlu0 %v1039
        %v1041 = vpop.xlane.xlu0 %1040
        %v1042 = vsel %vm597, %v1028, 0.0
        %1043 = vadd.xlane.f32.xlu0 %v1042
        %v1044 = vpop.xlane.xlu0 %1043
        %1049 = vrot.lane.b32.xlu0 %v444, 64
        %v1050 = vpop.permute.xlu0 %1049
        %1051 = vrot.lane.b32.xlu0 %v445, 64
        %v1052 = vpop.permute.xlu0 %1051
        %1053 = vrot.lane.b32.xlu0 %v446, 64
        %v1054 = vpop.permute.xlu0 %1053
        %1055 = vrot.lane.b32.xlu0 %v447, 64
        %v1056 = vpop.permute.xlu0 %1055
        %v1062 = vsel %vm489, %v1013, 0
        %v1065 = vsel %vm489, %v1014, 0
        %v1068 = vsel %vm489, %v1015, 0
        %v1071 = vsel %vm489, %v1016, 0
        %1073 = vmatpush.msra.mxu0 0.0
        %1074 = vmatpush.msra.mxu0 0.0
        %1075 = vmatpush.msra.mxu0 0.0
        %1076 = vmatpush.msra.mxu0 0.0
        %1077 = vmatpush.msra.mxu0 0.0
        %1078 = vmatpush.msra.mxu0 0.0
        %1079 = vmatpush.msra.mxu0 0.0
        %1080 = vmatpush.msra.mxu0 0.0
        %1081 = vmatpush.msra.mxu0 0.0
        %1082 = vmatpush.msra.mxu0 0.0
        %1083 = vmatpush.msra.mxu0 0.0
        %1084 = vmatpush.msra.mxu0 0.0
        %1085 = vmatpush.msra.mxu0 %v1056
        %1086 = vmatpush.msra.mxu0 %v1054
        %1087 = vmatpush.msra.mxu0 %v1052
        %1088 = vmatpush.msra.mxu0 %v1050
        %1089 = vmatmul.f32.gmra.mxu0 %v1062
        %v1090 = vpop.f32.mrf.mxu0
        %v1091 = vadd.f32 0.0, %v1090
        %1092 = vmatmul.f32.gmra.mxu0 %v1065
        %v1093 = vpop.f32.mrf.mxu0
        %v1094 = vadd.f32 0.0, %v1093
        %1095 = vmatmul.f32.gmra.mxu0 %v1068
        %v1096 = vpop.f32.mrf.mxu0
        %v1097 = vadd.f32 0.0, %v1096
        %1098 = vmatmul.f32.gmra.mxu0 %v1071
        %v1099 = vpop.f32.mrf.mxu0
        %v1100 = vadd.f32 0.0, %v1099
        %1101 = vdwg.mxu0
        %1102 = vmatpush.msra.mxu0 0.0
        %1103 = vmatpush.msra.mxu0 0.0
        %1104 = vmatpush.msra.mxu0 0.0
        %1105 = vmatpush.msra.mxu0 0.0
        %1106 = vmatpush.msra.mxu0 0.0
        %1107 = vmatpush.msra.mxu0 0.0
        %1108 = vmatpush.msra.mxu0 0.0
        %1109 = vmatpush.msra.mxu0 0.0
        %1110 = vmatpush.msra.mxu0 %v951
        %1111 = vmatpush.msra.mxu0 %v950
        %1112 = vmatpush.msra.mxu0 %v949
        %1113 = vmatpush.msra.mxu0 %v948
        %1114 = vmatpush.msra.mxu0 %v947
        %1115 = vmatpush.msra.mxu0 %v946
        %1116 = vmatpush.msra.mxu0 %v945
        %1117 = vmatpush.msra.mxu0 %v944
        %1118 = vmatmul.f32.gmra.mxu0 %v968
        %v1119 = vpop.f32.mrf.mxu0
        %v1120 = vadd.f32 %v1091, %v1119
        %1121 = vmatmul.f32.gmra.mxu0 %v970
        %v1122 = vpop.f32.mrf.mxu0
        %v1123 = vadd.f32 %v1094, %v1122
        %1124 = vmatmul.f32.gmra.mxu0 %v972
        %v1125 = vpop.f32.mrf.mxu0
        %v1126 = vadd.f32 %v1097, %v1125
        %1127 = vmatmul.f32.gmra.mxu0 %v974
        %v1128 = vpop.f32.mrf.mxu0
        %v1129 = vadd.f32 %v1100, %v1128
        %1130 = vdwg.mxu0
        %v1131 = vmul.f32 %v1035, %v444
        %v1132 = vmul.f32 %v1038, %v445
        %v1133 = vmul.f32 %v1041, %v446
        %v1134 = vmul.f32 %v1044, %v447
        %1139 = vrot.lane.b32.xlu0 %v1131, 64
        %v1140 = vpop.permute.xlu0 %1139
        %1141 = vrot.lane.b32.xlu0 %v1132, 64
        %v1142 = vpop.permute.xlu0 %1141
        %1143 = vrot.lane.b32.xlu0 %v1133, 64
        %v1144 = vpop.permute.xlu0 %1143
        %1145 = vrot.lane.b32.xlu0 %v1134, 64
        %v1146 = vpop.permute.xlu0 %1145
        %v1151 = vadd.f32 %v1120, %v1140
        %v1152 = vadd.f32 %v1123, %v1142
        %v1153 = vadd.f32 %v1126, %v1144
        %v1154 = vadd.f32 %v1129, %v1146
        %1159 = vrot.lane.b32.xlu0 %v576, 64
        %v1160 = vpop.permute.xlu0 %1159
        %1161 = vrot.lane.b32.xlu0 %v577, 64
        %v1162 = vpop.permute.xlu0 %1161
        %1163 = vrot.lane.b32.xlu0 %v578, 64
        %v1164 = vpop.permute.xlu0 %1163
        %1165 = vrot.lane.b32.xlu0 %v579, 64
        %v1166 = vpop.permute.xlu0 %1165
        %1171 = vxpose.xlu0.b32.start [1/16] %v1160, 128
        %1172 = vxpose.xlu0.b32.cont [2/16] %v1162, 128
        %1173 = vxpose.xlu0.b32.cont [3/16] %v1164, 128
        %1174 = vxpose.xlu0.b32.cont [4/16] %v1166, 128
        %1175 = vxpose.xlu0.b32.cont [5/16] 0.0, 128
        %1176 = vxpose.xlu0.b32.cont [6/16] 0.0, 128
        %1177 = vxpose.xlu0.b32.cont [7/16] 0.0, 128
        %1178 = vxpose.xlu0.b32.cont [8/16] 0.0, 128
        %1179 = vxpose.xlu0.b32.cont [9/16] 0.0, 128
        %1180 = vxpose.xlu0.b32.cont [10/16] 0.0, 128
        %1181 = vxpose.xlu0.b32.cont [11/16] 0.0, 128
        %1182 = vxpose.xlu0.b32.cont [12/16] 0.0, 128
        %1183 = vxpose.xlu0.b32.cont [13/16] 0.0, 128
        %1184 = vxpose.xlu0.b32.cont [14/16] 0.0, 128
        %1185 = vxpose.xlu0.b32.cont [15/16] 0.0, 128
        %1186 = vxpose.xlu0.b32.end [16/16] 0.0, 128
        %v1187 = vpop.trf.xlu0
        %v1188 = vpop.trf.xlu0
        %v1189 = vpop.trf.xlu0
        %v1190 = vpop.trf.xlu0
        %v1191 = vpop.trf.xlu0
        %v1192 = vpop.trf.xlu0
        %v1193 = vpop.trf.xlu0
        %v1194 = vpop.trf.xlu0
        %v1195 = vpop.trf.xlu0
        %v1196 = vpop.trf.xlu0
        %v1197 = vpop.trf.xlu0
        %v1198 = vpop.trf.xlu0
        %v1199 = vpop.trf.xlu0
        %v1200 = vpop.trf.xlu0
        %v1201 = vpop.trf.xlu0
        %v1202 = vpop.trf.xlu0
        %v1204 = vsel %vm489, %v1187, 0
        %v1207 = vsel %vm489, %v1188, 0
        %v1210 = vsel %vm489, %v1189, 0
        %v1213 = vsel %vm489, %v1190, 0
        %v1216 = vsel %vm489, %v1191, 0
        %v1219 = vsel %vm489, %v1192, 0
        %v1222 = vsel %vm489, %v1193, 0
        %v1225 = vsel %vm489, %v1194, 0
        %1227 = vmatpush.msra.mxu0 0.0
        %1228 = vmatpush.msra.mxu0 0.0
        %1229 = vmatpush.msra.mxu0 0.0
        %1230 = vmatpush.msra.mxu0 0.0
        %1231 = vmatpush.msra.mxu0 0.0
        %1232 = vmatpush.msra.mxu0 0.0
        %1233 = vmatpush.msra.mxu0 0.0
        %1234 = vmatpush.msra.mxu0 0.0
        %1235 = vmatpush.msra.mxu0 0.0
        %1236 = vmatpush.msra.mxu0 0.0
        %1237 = vmatpush.msra.mxu0 0.0
        %1238 = vmatpush.msra.mxu0 0.0
        %1239 = vmatpush.msra.mxu0 %v1056
        %1240 = vmatpush.msra.mxu0 %v1054
        %1241 = vmatpush.msra.mxu0 %v1052
        %1242 = vmatpush.msra.mxu0 %v1050
        %1243 = vmatmul.f32.gmra.mxu0 %v1204
        %v1244 = vpop.f32.mrf.mxu0
        %v1245 = vadd.f32 0.0, %v1244
        %1246 = vmatmul.f32.gmra.mxu0 %v1207
        %v1247 = vpop.f32.mrf.mxu0
        %v1248 = vadd.f32 0.0, %v1247
        %1249 = vmatmul.f32.gmra.mxu0 %v1210
        %v1250 = vpop.f32.mrf.mxu0
        %v1251 = vadd.f32 0.0, %v1250
        %1252 = vmatmul.f32.gmra.mxu0 %v1213
        %v1253 = vpop.f32.mrf.mxu0
        %v1254 = vadd.f32 0.0, %v1253
        %1255 = vmatmul.f32.gmra.mxu0 %v1216
        %v1256 = vpop.f32.mrf.mxu0
        %v1257 = vadd.f32 0.0, %v1256
        %1258 = vmatmul.f32.gmra.mxu0 %v1219
        %v1259 = vpop.f32.mrf.mxu0
        %v1260 = vadd.f32 0.0, %v1259
        %1261 = vmatmul.f32.gmra.mxu0 %v1222
        %v1262 = vpop.f32.mrf.mxu0
        %v1263 = vadd.f32 0.0, %v1262
        %1264 = vmatmul.f32.gmra.mxu0 %v1225
        %v1265 = vpop.f32.mrf.mxu0
        %v1266 = vadd.f32 0.0, %v1265
        %1267 = vdwg.mxu0
        %1268 = vrot.lane.b32.xlu0 %v845, 64
        %v1269 = vpop.permute.xlu0 %1268
        %1271 = vxpose.xlu0.b32.start [1/16] %v1269, 128
        %1272 = vxpose.xlu0.b32.cont [2/16] 0.0, 128
        %1273 = vxpose.xlu0.b32.cont [3/16] 0.0, 128
        %1274 = vxpose.xlu0.b32.cont [4/16] 0.0, 128
        %1275 = vxpose.xlu0.b32.cont [5/16] 0.0, 128
        %1276 = vxpose.xlu0.b32.cont [6/16] 0.0, 128
        %1277 = vxpose.xlu0.b32.cont [7/16] 0.0, 128
        %1278 = vxpose.xlu0.b32.cont [8/16] 0.0, 128
        %1279 = vxpose.xlu0.b32.cont [9/16] 0.0, 128
        %1280 = vxpose.xlu0.b32.cont [10/16] 0.0, 128
        %1281 = vxpose.xlu0.b32.cont [11/16] 0.0, 128
        %1282 = vxpose.xlu0.b32.cont [12/16] 0.0, 128
        %1283 = vxpose.xlu0.b32.cont [13/16] 0.0, 128
        %1284 = vxpose.xlu0.b32.cont [14/16] 0.0, 128
        %1285 = vxpose.xlu0.b32.cont [15/16] 0.0, 128
        %1286 = vxpose.xlu0.b32.end [16/16] 0.0, 128
        %v1287 = vpop.trf.xlu0
        %v1288 = vpop.trf.xlu0
        %v1289 = vpop.trf.xlu0
        %v1290 = vpop.trf.xlu0
        %v1291 = vpop.trf.xlu0
        %v1292 = vpop.trf.xlu0
        %v1293 = vpop.trf.xlu0
        %v1294 = vpop.trf.xlu0
        %v1295 = vpop.trf.xlu0
        %v1296 = vpop.trf.xlu0
        %v1297 = vpop.trf.xlu0
        %v1298 = vpop.trf.xlu0
        %v1299 = vpop.trf.xlu0
        %v1300 = vpop.trf.xlu0
        %v1301 = vpop.trf.xlu0
        %v1302 = vpop.trf.xlu0
        %1304 = vset.pattern.permute.xlu0 0
        %1305 = vperm.xlu0 %1304, %v1287
        %v1306 = vpop.permute.xlu0 %1305
        %1309 = vset.pattern.permute.xlu0 0
        %1310 = vperm.xlu0 %1309, %v1288
        %v1311 = vpop.permute.xlu0 %1310
        %1314 = vset.pattern.permute.xlu0 0
        %1315 = vperm.xlu0 %1314, %v1289
        %v1316 = vpop.permute.xlu0 %1315
        %1319 = vset.pattern.permute.xlu0 0
        %1320 = vperm.xlu0 %1319, %v1290
        %v1321 = vpop.permute.xlu0 %1320
        %1324 = vset.pattern.permute.xlu0 0
        %1325 = vperm.xlu0 %1324, %v1291
        %v1326 = vpop.permute.xlu0 %1325
        %1329 = vset.pattern.permute.xlu0 0
        %1330 = vperm.xlu0 %1329, %v1292
        %v1331 = vpop.permute.xlu0 %1330
        %1334 = vset.pattern.permute.xlu0 0
        %1335 = vperm.xlu0 %1334, %v1293
        %v1336 = vpop.permute.xlu0 %1335
        %1339 = vset.pattern.permute.xlu0 0
        %1340 = vperm.xlu0 %1339, %v1294
        %v1341 = vpop.permute.xlu0 %1340
        %v1343 = vmul.f32 %v944, %v1306
        %v1344 = vmul.f32 %v945, %v1311
        %v1345 = vmul.f32 %v946, %v1316
        %v1346 = vmul.f32 %v947, %v1321
        %v1347 = vmul.f32 %v948, %v1326
        %v1348 = vmul.f32 %v949, %v1331
        %v1349 = vmul.f32 %v950, %v1336
        %v1350 = vmul.f32 %v951, %v1341
        %v1351 = vadd.f32 %v1343, %v1245
        %v1352 = vadd.f32 %v1344, %v1248
        %v1353 = vadd.f32 %v1345, %v1251
        %v1354 = vadd.f32 %v1346, %v1254
        %v1355 = vadd.f32 %v1347, %v1257
        %v1356 = vadd.f32 %v1348, %v1260
        %v1357 = vadd.f32 %v1349, %v1263
        %v1358 = vadd.f32 %v1350, %v1266
        %1359 = vst.msk [vmem:[%s943] sm:$0xff] %vm597, %v1351
        %1360 = vst.msk [vmem:[%s943 + $0x8] sm:$0xff] %vm597, %v1352
        %1361 = vst.msk [vmem:[%s943 + $0x10] sm:$0xff] %vm597, %v1353
        %1362 = vst.msk [vmem:[%s943 + $0x18] sm:$0xff] %vm597, %v1354
        %1363 = vst.msk [vmem:[%s943 + $0x20] sm:$0xff] %vm597, %v1355
        %1364 = vst.msk [vmem:[%s943 + $0x28] sm:$0xff] %vm597, %v1356
        %1365 = vst.msk [vmem:[%s943 + $0x30] sm:$0xff] %vm597, %v1357
        %1366 = vst.msk [vmem:[%s943 + $0x38] sm:$0xff] %vm597, %v1358
        %1371 = vrot.lane.b32.xlu0 %v1151, 64
        %v1372 = vpop.permute.xlu0 %1371
        %1373 = vrot.lane.b32.xlu0 %v1152, 64
        %v1374 = vpop.permute.xlu0 %1373
        %1375 = vrot.lane.b32.xlu0 %v1153, 64
        %v1376 = vpop.permute.xlu0 %1375
        %1377 = vrot.lane.b32.xlu0 %v1154, 64
        %v1378 = vpop.permute.xlu0 %1377
        %v1383 = vsel %vm597, %v741, %v1372
        %v1384 = vsel %vm597, %v742, %v1374
        %v1385 = vsel %vm597, %v743, %v1376
        %v1386 = vsel %vm597, %v744, %v1378
        %v1387 = vpack.c.bf16 %v1383, %v1383
        %v1388 = vpack.c.bf16 %v1384, %v1384
        %v1389 = vpack.c.bf16 %v1385, %v1385
        %v1390 = vpack.c.bf16 %v1386, %v1386
        %1391 = vst [vmem:[%s397] sm:$0xf] %v1387
        %1392 = vst [vmem:[%s397 + $0x4] sm:$0xf] %v1388
        %1393 = vst [vmem:[%s397 + $0x8] sm:$0xf] %v1389
        %1394 = vst [vmem:[%s397 + $0xc] sm:$0xf] %v1390
        %s1395 = sand.u32 %s183, 1
        %s1396 = scalar_lea.sflag [#allocation5], %s1395
        %s1397 = sand.u32 %s183, 1
        %s1398 = smul.addr %s1397, 16
        %s1399 = scalar_lea.vmem [#allocation11], %s1398
        // Predicated region
        $region61: #{pallas_wkv6.1} parent=39 // pred_check
          %p1400 = pneg %p193
        $region62: #{pallas_wkv6.1} parent=39 // pred_check_branch
          %1402 = sbr.rel (%p1400) target = $region64
        $region63: #{pallas_wkv6.1} parent=39 // pred_region
          %s1403 = smul.u32 4, %s33
          %1405 = vsyncadd %s1396, 0
          %s1406 = smul.addr %s32, 8
          %s1407 = sadd.s32 %s1403, %s1406
          %s1408 = smul.addr %s1407, 4
          %s1409 = scalar_lea.hbm %s5, %s1408
          %s1410 = sshll.u32 %s1399, 4
          %s1411 = int_to_ptr.vmem [resolvable:$true] %s1410
          %s1412 = sshll.u32 %s1409, 4
          %s1413 = int_to_ptr.hbm [resolvable:$true] %s1412
          %1418 = dma.vmem_to_hbm [thread:$0]  %s1411, 256, %s1413, %s1396, 64, 64, 4
        $region64: #{pallas_wkv6.1} parent=39 // pred_fallthru
          _
      $region40: #{pallas_wkv6.1} parent=5 // pred_fallthru
        _
      %p1419 = scmp.le.s32.totalorder 2, %s23
      // Predicated region
      $region65: #{pallas_wkv6.1} parent=5 // pred_check
        %p1420 = pneg %p1419
      $region66: #{pallas_wkv6.1} parent=5 // pred_check_branch
        %1422 = sbr.rel (%p1420) target = $region68
      $region67: #{pallas_wkv6.1} parent=5 // pred_region
        %s1423 = ssub.s32 %s23, 2
        // Predicated region
        $region69: #{pallas_wkv6.1} parent=67 // pred_check
          %p1424 = pneg %p199
        $region70: #{pallas_wkv6.1} parent=67 // pred_check_branch
          %1426 = sbr.rel (%p1424) target = $region72
        $region71: #{pallas_wkv6.1} parent=67 // pred_region
          %s1427 = sand.u32 %s184, 1
          %s1428 = scalar_lea.sflag [#allocation5], %s1427
          %s1429 = sand.u32 %s184, 1
          %s1430 = smul.addr %s1429, 16
          %s1431 = scalar_lea.vmem [#allocation11], %s1430
          %1433 = dma.done %s1428, 256
        $region72: #{pallas_wkv6.1} parent=67 // pred_fallthru
          _
      $region68: #{pallas_wkv6.1} parent=5 // pred_fallthru
        _
    $region6: #{pallas_wkv6.1} parent=1 // loop_footer
      %s27 = sadd.s32 1, %s23
    $region7: #{pallas_wkv6.1} parent=1 // loop_footer_branch
      %22 = sbr.rel target = $region3
    $region8: #{pallas_wkv6.1} parent=1 // loop_exit
      _
    %1434 = vsyncpa [#allocation4], 1
    %s1435 = scalar_lea.sflag [#allocation4], 1
    %1436 = vsyncpa %s1435, 1
    %1437 = vsyncpa [#allocation7], 1
    %s1438 = scalar_lea.sflag [#allocation7], 1
    %1439 = vsyncpa %s1438, 1
    %1440 = vsyncpa [#allocation10], 1
    %s1441 = scalar_lea.sflag [#allocation10], 1
    %1442 = vsyncpa %s1441, 1
    %1443 = vsyncpa [#allocation5], 1
    %s1444 = scalar_lea.sflag [#allocation5], 1
    %1445 = vsyncpa %s1444, 1

</llo_original>
